<compile_context>
chip_gen: v5e
topology: v5e:2x2
jax: 0.10.0
libtpu: 0.0.40
codegen_flags: <defaults>
</compile_context>

<pallas_src>
import functools

import jax
import jax.numpy as jnp
from jax.experimental import pallas as pl
from jax.experimental.pallas import tpu as pltpu

_SUBLANE = 8     # f32 sublane tile
_LANE = 128      # pad width for the shift scratches (keeps center writes aligned)
# tap order (dh, dw) = (dy-1, dx-1), dy-major -- must match weight re-layout.
_TAPS = tuple((dy - 1, dx - 1) for dy in range(3) for dx in range(3))


# ----------------------------------------------------------------------------
# Fused kernel: conv1+bias+ReLU -> maxpool(2,2) -> conv2+bias+ReLU, per image.
# All intermediates stay in VMEM; all shifts are static slices of zero-padded
# scratches; all masks / selection matrices come in precomputed.
# ----------------------------------------------------------------------------
def _fused_features_kernel(x_ref, w1_ref, w2_ref, sel_ref, mk1_ref, mk2_ref,
                           relu1_ref, relu2_ref,
                           xpad_ref, a1_ref, p1_ref, p2_ref, a2_ref,
                           *, h, w):
    f32 = jnp.float32
    cin_p, m1 = x_ref.shape           # padded input channels, H*W
    c1 = relu1_ref.shape[0]
    c2, m2 = relu2_ref.shape          # conv2 out channels, (H/2)*(W/2)
    wo = w // 2
    pad = _LANE

    # ---- layers "0" + "1": Conv2d(3x3, pad=1) + bias + ReLU ------------------
    # Zero-padded copy of x -> each of the 9 taps is a static lane slice.
    # (Pads re-zeroed every step: cheap, and safe under "parallel" core split.)
    xpad_ref[:, pl.ds(0, pad)] = jnp.zeros((cin_p, pad), f32)
    xpad_ref[:, pl.ds(pad + m1, pad)] = jnp.zeros((cin_p, pad), f32)
    xpad_ref[:, pl.ds(pad, m1)] = x_ref[...]
    mk1 = mk1_ref[...]                                         # (9, m1) 0/1 masks
    for t, (dh, dw) in enumerate(_TAPS):
        tap = xpad_ref[:, pl.ds(pad + dh * w + dw, m1)] * mk1[t:t + 1, :]
        a1_ref[pl.ds(t * cin_p, cin_p), :] = tap               # aligned sublane slab
    # ones rows for the folded bias (weight column 9*cin_p holds the bias).
    a1_ref[pl.ds(9 * cin_p, _SUBLANE), :] = jnp.ones((_SUBLANE, m1), f32)

    r1 = jnp.maximum(
        jnp.dot(w1_ref[...], a1_ref[...], preferred_element_type=f32), 0.0)
    relu1_ref[...] = r1                                        # lane-dense (c1, m1)

    # ---- layer "2": MaxPool2d(2, 2) ------------------------------------------
    # window max = elementwise max of 4 statically shifted copies (right-padded
    # with zeros so no lane ever reads garbage); the 4x compaction is one exact
    # 0/1 pass-through matmul with the host-precomputed selection matrix.
    p1_ref[:, pl.ds(m1, pad)] = jnp.zeros((c1, pad), f32)
    p1_ref[:, pl.ds(0, m1)] = r1
    win = jnp.maximum(
        jnp.maximum(r1, p1_ref[:, pl.ds(1, m1)]),
        jnp.maximum(p1_ref[:, pl.ds(w, m1)], p1_ref[:, pl.ds(w + 1, m1)]))
    pooled = jnp.dot(win, sel_ref[...], preferred_element_type=f32)   # (c1, m2)

    # ---- layers "3" + "4": Conv2d(3x3, pad=1) + bias + ReLU ------------------
    p2_ref[:, pl.ds(0, pad)] = jnp.zeros((c1, pad), f32)
    p2_ref[:, pl.ds(pad + m2, pad)] = jnp.zeros((c1, pad), f32)
    p2_ref[:, pl.ds(pad, m2)] = pooled
    mk2 = mk2_ref[...]                                         # (9, m2)
    for t, (dh, dw) in enumerate(_TAPS):
        tap = p2_ref[:, pl.ds(pad + dh * wo + dw, m2)] * mk2[t:t + 1, :]
        a2_ref[pl.ds(t * c1, c1), :] = tap
    a2_ref[pl.ds(9 * c1, _SUBLANE), :] = jnp.ones((_SUBLANE, m2), f32)

    relu2_ref[...] = jnp.maximum(
        jnp.dot(w2_ref[...], a2_ref[...], preferred_element_type=f32), 0.0)


# ----------------------------------------------------------------------------
# One-off host-side layout prep (tiny, shape-dependent only -> constant folded)
# ----------------------------------------------------------------------------
def _conv_weight_matrix(w_oihw, bias, cin_pad, k_rows):
    """OIHW conv weight + bias -> (Cout, k_rows) matmul weight.

    Rows are tap-major ((dy,dx) outer, padded cin inner), matching the in-kernel
    im2col scratch; row 9*cin_pad carries the bias (multiplied by the in-kernel
    ones rows), the remaining rows up to k_rows are zero."""
    cout, cin, kh, kw = w_oihw.shape
    wt = jnp.transpose(w_oihw, (2, 3, 1, 0)).astype(jnp.float32)   # (3,3,cin,cout)
    wt = jnp.pad(wt, ((0, 0), (0, 0), (0, cin_pad - cin), (0, 0)))
    wm = wt.reshape(kh * kw * cin_pad, cout)
    extra = jnp.zeros((k_rows - kh * kw * cin_pad, cout), jnp.float32)
    extra = extra.at[0].set(bias.astype(jnp.float32))
    return jnp.concatenate([wm, extra], axis=0).T                  # (cout, k_rows)


def _tap_masks(h, w):
    """(9, h*w) 0/1 masks: mask[t, m] = 1 iff tap t of output pixel m reads a
    pixel inside the image (3x3 conv, pad=1, flat index m = row*w + col)."""
    pos = jnp.arange(h * w)
    row, col = pos // w, pos % w
    masks = []
    for dh, dw in _TAPS:
        masks.append((row + dh >= 0) & (row + dh < h) &
                     (col + dw >= 0) & (col + dw < w))
    return jnp.stack(masks).astype(jnp.float32)


def _pool_select(h, w):
    """(h*w, h/2*w/2) exact 0/1 selection: column j picks the flat index of the
    (even-row, even-col) corner of pooling window j."""
    ho, wo = h // 2, w // 2
    j = jnp.arange(ho * wo)
    src = 4 * (j // wo) * wo + 2 * (j % wo)
    return (jnp.arange(h * w)[:, None] == src[None, :]).astype(jnp.float32)


def feature_extractor_forward(x_nchw, params, extracted_layers):
    """Mirror of the PyTorch forward: run the `features` layers in order and
    collect outputs of layers named in `extracted_layers` (NCHW)."""
    n, cin, h, w = x_nchw.shape
    c1 = params["conv1_w"].shape[0]
    c2 = params["conv2_w"].shape[0]
    assert h % 2 == 0 and w % 2 == 0, "MaxPool2d(2,2) needs even spatial dims"
    assert c1 % _SUBLANE == 0, "conv2 input channels must be a sublane multiple"
    cin_pad = -(-cin // _SUBLANE) * _SUBLANE
    ho, wo = h // 2, w // 2
    m1, m2 = h * w, ho * wo
    k1 = 9 * cin_pad + _SUBLANE          # im2col rows incl. bias/ones rows
    k2 = 9 * c1 + _SUBLANE
    f32 = jnp.float32

    # Layout prep: per-image channel-major flat activations (NO transposes),
    # bias-folded weight matrices, precomputed masks and pooling selection.
    x_flat = jnp.pad(x_nchw.astype(f32),
                     ((0, 0), (0, cin_pad - cin), (0, 0), (0, 0))
                     ).reshape(n, cin_pad, m1)
    w1m = _conv_weight_matrix(params["conv1_w"], params["conv1_b"], cin_pad, k1)
    w2m = _conv_weight_matrix(params["conv2_w"], params["conv2_b"], c1, k2)
    mk1 = _tap_masks(h, w)               # (9, m1)
    mk2 = _tap_masks(ho, wo)             # (9, m2)
    sel = _pool_select(h, w)             # (m1, m2)

    def const_spec(shape):
        return pl.BlockSpec(shape, lambda i, _s=len(shape): (0,) * _s)

    flops = 2 * n * (c1 * k1 * m1 + c1 * m1 * m2 + c2 * k2 * m2)
    bytes_accessed = 4 * (x_flat.size + w1m.size + w2m.size + sel.size
                          + mk1.size + mk2.size + n * c1 * m1 + n * c2 * m2)

    relu1_f, relu2_f = pl.pallas_call(
        functools.partial(_fused_features_kernel, h=h, w=w),
        grid=(n,),
        out_shape=(jax.ShapeDtypeStruct((n, c1, m1), f32),
                   jax.ShapeDtypeStruct((n, c2, m2), f32)),
        in_specs=[
            pl.BlockSpec((None, cin_pad, m1), lambda i: (i, 0, 0)),  # x, per image
            const_spec((c1, k1)),      # conv1 weights (+bias column)
            const_spec((c2, k2)),      # conv2 weights (+bias column)
            const_spec((m1, m2)),      # pooling selection matrix
            const_spec((9, m1)),       # conv1 tap boundary masks
            const_spec((9, m2)),       # conv2 tap boundary masks
        ],
        out_specs=(pl.BlockSpec((None, c1, m1), lambda i: (i, 0, 0)),
                   pl.BlockSpec((None, c2, m2), lambda i: (i, 0, 0))),
        scratch_shapes=[
            pltpu.VMEM((cin_pad, m1 + 2 * _LANE), f32),   # zero-padded input
            pltpu.VMEM((k1, m1), f32),                    # conv1 im2col (+ones rows)
            pltpu.VMEM((c1, m1 + _LANE), f32),            # right-padded relu1 (pool)
            pltpu.VMEM((c1, m2 + 2 * _LANE), f32),        # zero-padded pooled map
            pltpu.VMEM((k2, m2), f32),                    # conv2 im2col (+ones rows)
        ],
        compiler_params=pltpu.CompilerParams(
            dimension_semantics=("parallel",)),
        cost_estimate=pl.CostEstimate(flops=flops, transcendentals=0,
                                      bytes_accessed=bytes_accessed),
    )(x_flat, w1m, w2m, sel, mk1, mk2)

    # Pure reshapes (no transposes): kernel already produced NC(HW) blocks.
    relu1 = relu1_f.reshape(n, c1, h, w)
    relu2 = relu2_f.reshape(n, c2, ho, wo)

    # Walk the layers in order, like the PyTorch loop, collecting requested ones.
    available = {"1": relu1, "4": relu2}
    outputs = []
    for name in ("0", "1", "2", "3", "4"):
        if name in extracted_layers:
            if name not in available:
                # TODO(synk): wire pre-ReLU conv ("0"/"3") and pooled ("2") maps
                # as extra kernel outputs if those layer names are requested.
                raise NotImplementedError(f"extraction of layer {name!r} not wired")
            outputs.append(available[name])
    return outputs


# ----------------------------------------------------------------------------
# Plain-jnp reference for the correctness check
# ----------------------------------------------------------------------------
def _ref_forward(x_nchw, params, extracted_layers):
    def conv_relu(x_nhwc, w_oihw, b):
        n_, h_, w_, cin_ = x_nhwc.shape
        cout = w_oihw.shape[0]
        xp = jnp.pad(x_nhwc, ((0, 0), (1, 1), (1, 1), (0, 0)))
        taps = [xp[:, dy:dy + h_, dx:dx + w_, :]
                for dy in range(3) for dx in range(3)]
        a = jnp.concatenate(taps, axis=-1).reshape(n_ * h_ * w_, 9 * cin_)
        wm = jnp.transpose(w_oihw, (2, 3, 1, 0)).reshape(9 * cin_, cout)
        y = jnp.maximum(a @ wm + b[None, :], 0.0)
        return y.reshape(n_, h_, w_, cout)

    outputs = []
    x = jnp.transpose(x_nchw, (0, 2, 3, 1))
    x = conv_relu(x, params["conv1_w"], params["conv1_b"])
    if "1" in extracted_layers:
        outputs.append(jnp.transpose(x, (0, 3, 1, 2)))
    n_, h_, w_, c_ = x.shape
    x = jnp.max(x.reshape(n_, h_ // 2, 2, w_ // 2, 2, c_), axis=(2, 4))
    x = conv_relu(x, params["conv2_w"], params["conv2_b"])
    if "4" in extracted_layers:
        outputs.append(jnp.transpose(x, (0, 3, 1, 2)))
    return outputs


# ----------------------------------------------------------------------------
# Main
# ----------------------------------------------------------------------------
if __name__ == "__main__":
    key = jax.random.PRNGKey(0)
    kx, kw1, kb1, kw2, kb2 = jax.random.split(key, 5)

    N, CIN, H, W = 2, 4, 16, 16
    C1, C2 = 8, 16

    x = jax.random.normal(kx, (N, CIN, H, W), dtype=jnp.float32)

    # Deterministic synthetic parameters (PyTorch Conv2d weight layout: OIHW).
    params = {
        "conv1_w": 0.1 * jax.random.normal(kw1, (C1, CIN, 3, 3), dtype=jnp.float32),
        "conv1_b": 0.01 * jax.random.normal(kb1, (C1,), dtype=jnp.float32),
        "conv2_w": 0.1 * jax.random.normal(kw2, (C2, C1, 3, 3), dtype=jnp.float32),
        "conv2_b": 0.01 * jax.random.normal(kb2, (C2,), dtype=jnp.float32),
    }
    extracted_layers = ("1", "4")

    fwd = jax.jit(functools.partial(
        feature_extractor_forward, extracted_layers=extracted_layers))
    outs = fwd(x, params)
    outs = [jax.block_until_ready(o) for o in outs]

    # sanity check against a plain-jnp reference
    refs = _ref_forward(x, params, extracted_layers)
    assert len(outs) == len(refs) == 2
    assert outs[0].shape == (N, C1, H, W)
    assert outs[1].shape == (N, C2, H // 2, W // 2)
    for o, r in zip(outs, refs):
        assert float(jnp.max(jnp.abs(o - r))) < 1e-4

    print("KERNEL_OK")
</pallas_src>

<mosaic_0001>
module attributes {stable_mosaic.version = 11 : i64} {
  func.func @_fused_features_kernel(%arg0: i32, %arg1: memref<1x8x256xf32, #tpu.memory_space<vmem>>, %arg2: memref<8x80xf32, #tpu.memory_space<vmem>>, %arg3: memref<16x80xf32, #tpu.memory_space<vmem>>, %arg4: memref<256x64xf32, #tpu.memory_space<vmem>>, %arg5: memref<9x256xf32, #tpu.memory_space<vmem>>, %arg6: memref<9x64xf32, #tpu.memory_space<vmem>>, %arg7: memref<1x8x256xf32, #tpu.memory_space<vmem>>, %arg8: memref<1x16x64xf32, #tpu.memory_space<vmem>>, %arg9: memref<8x512xf32, #tpu.memory_space<vmem>>, %arg10: memref<80x256xf32, #tpu.memory_space<vmem>>, %arg11: memref<8x384xf32, #tpu.memory_space<vmem>>, %arg12: memref<8x320xf32, #tpu.memory_space<vmem>>, %arg13: memref<80x64xf32, #tpu.memory_space<vmem>>) attributes {dimension_semantics = [#tpu.dimension_semantics<parallel>], iteration_bounds = array<i64: 2>, scalar_prefetch = 0 : i64, scratch_operands = 5 : i64, tpu.core_type = #tpu.core_type<tc>, window_params = [{transform_indices = @transform_0, window_bounds = array<i64: 1, 8, 256>}, {pipeline_mode = #tpu.pipeline_mode<synchronous>, transform_indices = @transform_1, window_bounds = array<i64: 8, 80>}, {pipeline_mode = #tpu.pipeline_mode<synchronous>, transform_indices = @transform_2, window_bounds = array<i64: 16, 80>}, {pipeline_mode = #tpu.pipeline_mode<synchronous>, transform_indices = @transform_3, window_bounds = array<i64: 256, 64>}, {pipeline_mode = #tpu.pipeline_mode<synchronous>, transform_indices = @transform_4, window_bounds = array<i64: 9, 256>}, {pipeline_mode = #tpu.pipeline_mode<synchronous>, transform_indices = @transform_5, window_bounds = array<i64: 9, 64>}, {transform_indices = @transform_6, window_bounds = array<i64: 1, 8, 256>}, {transform_indices = @transform_7, window_bounds = array<i64: 1, 16, 64>}]} {
    %cst = arith.constant 0.000000e+00 : f32
    %0 = vector.broadcast %cst : f32 to vector<8x128xf32>
    %c0 = arith.constant 0 : index
    %c0_0 = arith.constant 0 : index
    %1 = vector.load %arg9[%c0, %c0_0] : memref<8x512xf32, #tpu.memory_space<vmem>>, vector<8x128xf32>
    tpu.vector_store %arg9[%c0, %c0_0], %0 {strides = array<i32>} : memref<8x512xf32, #tpu.memory_space<vmem>>, vector<8x128xf32>,
    %cst_1 = arith.constant 0.000000e+00 : f32
    %2 = vector.broadcast %cst_1 : f32 to vector<8x128xf32>
    %c0_2 = arith.constant 0 : index
    %c384 = arith.constant 384 : index
    %3 = vector.load %arg9[%c0_2, %c384] : memref<8x512xf32, #tpu.memory_space<vmem>>, vector<8x128xf32>
    tpu.vector_store %arg9[%c0_2, %c384], %2 {strides = array<i32>} : memref<8x512xf32, #tpu.memory_space<vmem>>, vector<8x128xf32>,
    %c0_3 = arith.constant 0 : index
    %c0_4 = arith.constant 0 : index
    %c0_5 = arith.constant 0 : index
    %4 = vector.load %arg1[%c0_3, %c0_4, %c0_5] : memref<1x8x256xf32, #tpu.memory_space<vmem>>, vector<1x8x256xf32>
    %5 = vector.shape_cast %4 : vector<1x8x256xf32> to vector<8x256xf32>
    %c0_6 = arith.constant 0 : index
    %c128 = arith.constant 128 : index
    %6 = vector.load %arg9[%c0_6, %c128] : memref<8x512xf32, #tpu.memory_space<vmem>>, vector<8x256xf32>
    tpu.vector_store %arg9[%c0_6, %c128], %5 {strides = array<i32>} : memref<8x512xf32, #tpu.memory_space<vmem>>, vector<8x256xf32>,
    %c0_7 = arith.constant 0 : index
    %c0_8 = arith.constant 0 : index
    %7 = vector.load %arg5[%c0_7, %c0_8] : memref<9x256xf32, #tpu.memory_space<vmem>>, vector<9x256xf32>
    %c0_9 = arith.constant 0 : index
    %c111 = arith.constant 111 : index
    %8 = vector.load %arg9[%c0_9, %c111] : memref<8x512xf32, #tpu.memory_space<vmem>>, vector<8x256xf32>
    %9 = vector.extract_strided_slice %7 {offsets = [0, 0], sizes = [1, 256], strides = [1, 1]} : vector<9x256xf32> to vector<1x256xf32>
    %10 = vector.broadcast %9 : vector<1x256xf32> to vector<8x256xf32>
    %11 = arith.mulf %8, %10 : vector<8x256xf32>
    %c0_10 = arith.constant 0 : index
    %c0_11 = arith.constant 0 : index
    %12 = vector.load %arg10[%c0_10, %c0_11] : memref<80x256xf32, #tpu.memory_space<vmem>>, vector<8x256xf32>
    tpu.vector_store %arg10[%c0_10, %c0_11], %11 {strides = array<i32>} : memref<80x256xf32, #tpu.memory_space<vmem>>, vector<8x256xf32>,
    %c0_12 = arith.constant 0 : index
    %c112 = arith.constant 112 : index
    %13 = vector.load %arg9[%c0_12, %c112] : memref<8x512xf32, #tpu.memory_space<vmem>>, vector<8x256xf32>
    %14 = vector.extract_strided_slice %7 {offsets = [1, 0], sizes = [1, 256], strides = [1, 1]} : vector<9x256xf32> to vector<1x256xf32>
    %15 = vector.broadcast %14 : vector<1x256xf32> to vector<8x256xf32>
    %16 = arith.mulf %13, %15 : vector<8x256xf32>
    %c8 = arith.constant 8 : index
    %c0_13 = arith.constant 0 : index
    %17 = vector.load %arg10[%c8, %c0_13] : memref<80x256xf32, #tpu.memory_space<vmem>>, vector<8x256xf32>
    tpu.vector_store %arg10[%c8, %c0_13], %16 {strides = array<i32>} : memref<80x256xf32, #tpu.memory_space<vmem>>, vector<8x256xf32>,
    %c0_14 = arith.constant 0 : index
    %c113 = arith.constant 113 : index
    %18 = vector.load %arg9[%c0_14, %c113] : memref<8x512xf32, #tpu.memory_space<vmem>>, vector<8x256xf32>
    %19 = vector.extract_strided_slice %7 {offsets = [2, 0], sizes = [1, 256], strides = [1, 1]} : vector<9x256xf32> to vector<1x256xf32>
    %20 = vector.broadcast %19 : vector<1x256xf32> to vector<8x256xf32>
    %21 = arith.mulf %18, %20 : vector<8x256xf32>
    %c16 = arith.constant 16 : index
    %c0_15 = arith.constant 0 : index
    %22 = vector.load %arg10[%c16, %c0_15] : memref<80x256xf32, #tpu.memory_space<vmem>>, vector<8x256xf32>
    tpu.vector_store %arg10[%c16, %c0_15], %21 {strides = array<i32>} : memref<80x256xf32, #tpu.memory_space<vmem>>, vector<8x256xf32>,
    %c0_16 = arith.constant 0 : index
    %c127 = arith.constant 127 : index
    %23 = vector.load %arg9[%c0_16, %c127] : memref<8x512xf32, #tpu.memory_space<vmem>>, vector<8x256xf32>
    %24 = vector.extract_strided_slice %7 {offsets = [3, 0], sizes = [1, 256], strides = [1, 1]} : vector<9x256xf32> to vector<1x256xf32>
    %25 = vector.broadcast %24 : vector<1x256xf32> to vector<8x256xf32>
    %26 = arith.mulf %23, %25 : vector<8x256xf32>
    %c24 = arith.constant 24 : index
    %c0_17 = arith.constant 0 : index
    %27 = vector.load %arg10[%c24, %c0_17] : memref<80x256xf32, #tpu.memory_space<vmem>>, vector<8x256xf32>
    tpu.vector_store %arg10[%c24, %c0_17], %26 {strides = array<i32>} : memref<80x256xf32, #tpu.memory_space<vmem>>, vector<8x256xf32>,
    %c0_18 = arith.constant 0 : index
    %c128_19 = arith.constant 128 : index
    %28 = vector.load %arg9[%c0_18, %c128_19] : memref<8x512xf32, #tpu.memory_space<vmem>>, vector<8x256xf32>
    %29 = vector.extract_strided_slice %7 {offsets = [4, 0], sizes = [1, 256], strides = [1, 1]} : vector<9x256xf32> to vector<1x256xf32>
    %30 = vector.broadcast %29 : vector<1x256xf32> to vector<8x256xf32>
    %31 = arith.mulf %28, %30 : vector<8x256xf32>
    %c32 = arith.constant 32 : index
    %c0_20 = arith.constant 0 : index
    %32 = vector.load %arg10[%c32, %c0_20] : memref<80x256xf32, #tpu.memory_space<vmem>>, vector<8x256xf32>
    tpu.vector_store %arg10[%c32, %c0_20], %31 {strides = array<i32>} : memref<80x256xf32, #tpu.memory_space<vmem>>, vector<8x256xf32>,
    %c0_21 = arith.constant 0 : index
    %c129 = arith.constant 129 : index
    %33 = vector.load %arg9[%c0_21, %c129] : memref<8x512xf32, #tpu.memory_space<vmem>>, vector<8x256xf32>
    %34 = vector.extract_strided_slice %7 {offsets = [5, 0], sizes = [1, 256], strides = [1, 1]} : vector<9x256xf32> to vector<1x256xf32>
    %35 = vector.broadcast %34 : vector<1x256xf32> to vector<8x256xf32>
    %36 = arith.mulf %33, %35 : vector<8x256xf32>
    %c40 = arith.constant 40 : index
    %c0_22 = arith.constant 0 : index
    %37 = vector.load %arg10[%c40, %c0_22] : memref<80x256xf32, #tpu.memory_space<vmem>>, vector<8x256xf32>
    tpu.vector_store %arg10[%c40, %c0_22], %36 {strides = array<i32>} : memref<80x256xf32, #tpu.memory_space<vmem>>, vector<8x256xf32>,
    %c0_23 = arith.constant 0 : index
    %c143 = arith.constant 143 : index
    %38 = vector.load %arg9[%c0_23, %c143] : memref<8x512xf32, #tpu.memory_space<vmem>>, vector<8x256xf32>
    %39 = vector.extract_strided_slice %7 {offsets = [6, 0], sizes = [1, 256], strides = [1, 1]} : vector<9x256xf32> to vector<1x256xf32>
    %40 = vector.broadcast %39 : vector<1x256xf32> to vector<8x256xf32>
    %41 = arith.mulf %38, %40 : vector<8x256xf32>
    %c48 = arith.constant 48 : index
    %c0_24 = arith.constant 0 : index
    %42 = vector.load %arg10[%c48, %c0_24] : memref<80x256xf32, #tpu.memory_space<vmem>>, vector<8x256xf32>
    tpu.vector_store %arg10[%c48, %c0_24], %41 {strides = array<i32>} : memref<80x256xf32, #tpu.memory_space<vmem>>, vector<8x256xf32>,
    %c0_25 = arith.constant 0 : index
    %c144 = arith.constant 144 : index
    %43 = vector.load %arg9[%c0_25, %c144] : memref<8x512xf32, #tpu.memory_space<vmem>>, vector<8x256xf32>
    %44 = vector.extract_strided_slice %7 {offsets = [7, 0], sizes = [1, 256], strides = [1, 1]} : vector<9x256xf32> to vector<1x256xf32>
    %45 = vector.broadcast %44 : vector<1x256xf32> to vector<8x256xf32>
    %46 = arith.mulf %43, %45 : vector<8x256xf32>
    %c56 = arith.constant 56 : index
    %c0_26 = arith.constant 0 : index
    %47 = vector.load %arg10[%c56, %c0_26] : memref<80x256xf32, #tpu.memory_space<vmem>>, vector<8x256xf32>
    tpu.vector_store %arg10[%c56, %c0_26], %46 {strides = array<i32>} : memref<80x256xf32, #tpu.memory_space<vmem>>, vector<8x256xf32>,
    %c0_27 = arith.constant 0 : index
    %c145 = arith.constant 145 : index
    %48 = vector.load %arg9[%c0_27, %c145] : memref<8x512xf32, #tpu.memory_space<vmem>>, vector<8x256xf32>
    %49 = vector.extract_strided_slice %7 {offsets = [8, 0], sizes = [1, 256], strides = [1, 1]} : vector<9x256xf32> to vector<1x256xf32>
    %50 = vector.broadcast %49 : vector<1x256xf32> to vector<8x256xf32>
    %51 = arith.mulf %48, %50 : vector<8x256xf32>
    %c64 = arith.constant 64 : index
    %c0_28 = arith.constant 0 : index
    %52 = vector.load %arg10[%c64, %c0_28] : memref<80x256xf32, #tpu.memory_space<vmem>>, vector<8x256xf32>
    tpu.vector_store %arg10[%c64, %c0_28], %51 {strides = array<i32>} : memref<80x256xf32, #tpu.memory_space<vmem>>, vector<8x256xf32>,
    %cst_29 = arith.constant 1.000000e+00 : f32
    %53 = vector.broadcast %cst_29 : f32 to vector<8x256xf32>
    %c72 = arith.constant 72 : index
    %c0_30 = arith.constant 0 : index
    %54 = vector.load %arg10[%c72, %c0_30] : memref<80x256xf32, #tpu.memory_space<vmem>>, vector<8x256xf32>
    tpu.vector_store %arg10[%c72, %c0_30], %53 {strides = array<i32>} : memref<80x256xf32, #tpu.memory_space<vmem>>, vector<8x256xf32>,
    %c0_31 = arith.constant 0 : index
    %c0_32 = arith.constant 0 : index
    %55 = vector.load %arg2[%c0_31, %c0_32] : memref<8x80xf32, #tpu.memory_space<vmem>>, vector<8x80xf32>
    %c0_33 = arith.constant 0 : index
    %c0_34 = arith.constant 0 : index
    %56 = vector.load %arg10[%c0_33, %c0_34] : memref<80x256xf32, #tpu.memory_space<vmem>>, vector<80x256xf32>
    %cst_35 = arith.constant dense<0.000000e+00> : vector<8x256xf32>
    %57 = tpu.matmul %55, %56, %cst_35 {dimension_numbers = #tpu.dot_dimension_numbers<[1], [0], [0], [1], [0, 0, 1, 1], [], []>} : vector<8x80xf32>, vector<80x256xf32>, vector<8x256xf32> -> vector<8x256xf32>
    %cst_36 = arith.constant 0.000000e+00 : f32
    %58 = vector.broadcast %cst_36 : f32 to vector<8x256xf32>
    %59 = arith.maximumf %57, %58 : vector<8x256xf32>
    %c0_37 = arith.constant 0 : index
    %c0_38 = arith.constant 0 : index
    %c0_39 = arith.constant 0 : index
    %60 = vector.load %arg7[%c0_37, %c0_38, %c0_39] : memref<1x8x256xf32, #tpu.memory_space<vmem>>, vector<1x8x256xf32>
    %61 = vector.shape_cast %60 : vector<1x8x256xf32> to vector<8x256xf32>
    %62 = vector.shape_cast %59 : vector<8x256xf32> to vector<1x8x256xf32>
    tpu.vector_store %arg7[%c0_37, %c0_38, %c0_39], %62 {strides = array<i32>} : memref<1x8x256xf32, #tpu.memory_space<vmem>>, vector<1x8x256xf32>,
    %cst_40 = arith.constant 0.000000e+00 : f32
    %63 = vector.broadcast %cst_40 : f32 to vector<8x128xf32>
    %c0_41 = arith.constant 0 : index
    %c256 = arith.constant 256 : index
    %64 = vector.load %arg11[%c0_41, %c256] : memref<8x384xf32, #tpu.memory_space<vmem>>, vector<8x128xf32>
    tpu.vector_store %arg11[%c0_41, %c256], %63 {strides = array<i32>} : memref<8x384xf32, #tpu.memory_space<vmem>>, vector<8x128xf32>,
    %c0_42 = arith.constant 0 : index
    %c0_43 = arith.constant 0 : index
    %65 = vector.load %arg11[%c0_42, %c0_43] : memref<8x384xf32, #tpu.memory_space<vmem>>, vector<8x256xf32>
    tpu.vector_store %arg11[%c0_42, %c0_43], %59 {strides = array<i32>} : memref<8x384xf32, #tpu.memory_space<vmem>>, vector<8x256xf32>,
    %c0_44 = arith.constant 0 : index
    %c1 = arith.constant 1 : index
    %66 = vector.load %arg11[%c0_44, %c1] : memref<8x384xf32, #tpu.memory_space<vmem>>, vector<8x256xf32>
    %67 = arith.maximumf %59, %66 : vector<8x256xf32>
    %c0_45 = arith.constant 0 : index
    %c16_46 = arith.constant 16 : index
    %68 = vector.load %arg11[%c0_45, %c16_46] : memref<8x384xf32, #tpu.memory_space<vmem>>, vector<8x256xf32>
    %c0_47 = arith.constant 0 : index
    %c17 = arith.constant 17 : index
    %69 = vector.load %arg11[%c0_47, %c17] : memref<8x384xf32, #tpu.memory_space<vmem>>, vector<8x256xf32>
    %70 = arith.maximumf %68, %69 : vector<8x256xf32>
    %71 = arith.maximumf %67, %70 : vector<8x256xf32>
    %c0_48 = arith.constant 0 : index
    %c0_49 = arith.constant 0 : index
    %72 = vector.load %arg4[%c0_48, %c0_49] : memref<256x64xf32, #tpu.memory_space<vmem>>, vector<256x64xf32>
    %cst_50 = arith.constant dense<0.000000e+00> : vector<8x64xf32>
    %73 = tpu.matmul %71, %72, %cst_50 {dimension_numbers = #tpu.dot_dimension_numbers<[1], [0], [0], [1], [0, 0, 1, 1], [], []>} : vector<8x256xf32>, vector<256x64xf32>, vector<8x64xf32> -> vector<8x64xf32>
    %cst_51 = arith.constant 0.000000e+00 : f32
    %74 = vector.broadcast %cst_51 : f32 to vector<8x128xf32>
    %c0_52 = arith.constant 0 : index
    %c0_53 = arith.constant 0 : index
    %75 = vector.load %arg12[%c0_52, %c0_53] : memref<8x320xf32, #tpu.memory_space<vmem>>, vector<8x128xf32>
    tpu.vector_store %arg12[%c0_52, %c0_53], %74 {strides = array<i32>} : memref<8x320xf32, #tpu.memory_space<vmem>>, vector<8x128xf32>,
    %cst_54 = arith.constant 0.000000e+00 : f32
    %76 = vector.broadcast %cst_54 : f32 to vector<8x128xf32>
    %c0_55 = arith.constant 0 : index
    %c192 = arith.constant 192 : index
    %77 = vector.load %arg12[%c0_55, %c192] : memref<8x320xf32, #tpu.memory_space<vmem>>, vector<8x128xf32>
    tpu.vector_store %arg12[%c0_55, %c192], %76 {strides = array<i32>} : memref<8x320xf32, #tpu.memory_space<vmem>>, vector<8x128xf32>,
    %c0_56 = arith.constant 0 : index
    %c128_57 = arith.constant 128 : index
    %78 = vector.load %arg12[%c0_56, %c128_57] : memref<8x320xf32, #tpu.memory_space<vmem>>, vector<8x64xf32>
    tpu.vector_store %arg12[%c0_56, %c128_57], %73 {strides = array<i32>} : memref<8x320xf32, #tpu.memory_space<vmem>>, vector<8x64xf32>,
    %c0_58 = arith.constant 0 : index
    %c0_59 = arith.constant 0 : index
    %79 = vector.load %arg6[%c0_58, %c0_59] : memref<9x64xf32, #tpu.memory_space<vmem>>, vector<9x64xf32>
    %c0_60 = arith.constant 0 : index
    %c119 = arith.constant 119 : index
    %80 = vector.load %arg12[%c0_60, %c119] : memref<8x320xf32, #tpu.memory_space<vmem>>, vector<8x64xf32>
    %81 = vector.extract_strided_slice %79 {offsets = [0, 0], sizes = [1, 64], strides = [1, 1]} : vector<9x64xf32> to vector<1x64xf32>
    %82 = vector.broadcast %81 : vector<1x64xf32> to vector<8x64xf32>
    %83 = arith.mulf %80, %82 : vector<8x64xf32>
    %c0_61 = arith.constant 0 : index
    %c0_62 = arith.constant 0 : index
    %84 = vector.load %arg13[%c0_61, %c0_62] : memref<80x64xf32, #tpu.memory_space<vmem>>, vector<8x64xf32>
    tpu.vector_store %arg13[%c0_61, %c0_62], %83 {strides = array<i32>} : memref<80x64xf32, #tpu.memory_space<vmem>>, vector<8x64xf32>,
    %c0_63 = arith.constant 0 : index
    %c120 = arith.constant 120 : index
    %85 = vector.load %arg12[%c0_63, %c120] : memref<8x320xf32, #tpu.memory_space<vmem>>, vector<8x64xf32>
    %86 = vector.extract_strided_slice %79 {offsets = [1, 0], sizes = [1, 64], strides = [1, 1]} : vector<9x64xf32> to vector<1x64xf32>
    %87 = vector.broadcast %86 : vector<1x64xf32> to vector<8x64xf32>
    %88 = arith.mulf %85, %87 : vector<8x64xf32>
    %c8_64 = arith.constant 8 : index
    %c0_65 = arith.constant 0 : index
    %89 = vector.load %arg13[%c8_64, %c0_65] : memref<80x64xf32, #tpu.memory_space<vmem>>, vector<8x64xf32>
    tpu.vector_store %arg13[%c8_64, %c0_65], %88 {strides = array<i32>} : memref<80x64xf32, #tpu.memory_space<vmem>>, vector<8x64xf32>,
    %c0_66 = arith.constant 0 : index
    %c121 = arith.constant 121 : index
    %90 = vector.load %arg12[%c0_66, %c121] : memref<8x320xf32, #tpu.memory_space<vmem>>, vector<8x64xf32>
    %91 = vector.extract_strided_slice %79 {offsets = [2, 0], sizes = [1, 64], strides = [1, 1]} : vector<9x64xf32> to vector<1x64xf32>
    %92 = vector.broadcast %91 : vector<1x64xf32> to vector<8x64xf32>
    %93 = arith.mulf %90, %92 : vector<8x64xf32>
    %c16_67 = arith.constant 16 : index
    %c0_68 = arith.constant 0 : index
    %94 = vector.load %arg13[%c16_67, %c0_68] : memref<80x64xf32, #tpu.memory_space<vmem>>, vector<8x64xf32>
    tpu.vector_store %arg13[%c16_67, %c0_68], %93 {strides = array<i32>} : memref<80x64xf32, #tpu.memory_space<vmem>>, vector<8x64xf32>,
    %c0_69 = arith.constant 0 : index
    %c127_70 = arith.constant 127 : index
    %95 = vector.load %arg12[%c0_69, %c127_70] : memref<8x320xf32, #tpu.memory_space<vmem>>, vector<8x64xf32>
    %96 = vector.extract_strided_slice %79 {offsets = [3, 0], sizes = [1, 64], strides = [1, 1]} : vector<9x64xf32> to vector<1x64xf32>
    %97 = vector.broadcast %96 : vector<1x64xf32> to vector<8x64xf32>
    %98 = arith.mulf %95, %97 : vector<8x64xf32>
    %c24_71 = arith.constant 24 : index
    %c0_72 = arith.constant 0 : index
    %99 = vector.load %arg13[%c24_71, %c0_72] : memref<80x64xf32, #tpu.memory_space<vmem>>, vector<8x64xf32>
    tpu.vector_store %arg13[%c24_71, %c0_72], %98 {strides = array<i32>} : memref<80x64xf32, #tpu.memory_space<vmem>>, vector<8x64xf32>,
    %c0_73 = arith.constant 0 : index
    %c128_74 = arith.constant 128 : index
    %100 = vector.load %arg12[%c0_73, %c128_74] : memref<8x320xf32, #tpu.memory_space<vmem>>, vector<8x64xf32>
    %101 = vector.extract_strided_slice %79 {offsets = [4, 0], sizes = [1, 64], strides = [1, 1]} : vector<9x64xf32> to vector<1x64xf32>
    %102 = vector.broadcast %101 : vector<1x64xf32> to vector<8x64xf32>
    %103 = arith.mulf %100, %102 : vector<8x64xf32>
    %c32_75 = arith.constant 32 : index
    %c0_76 = arith.constant 0 : index
    %104 = vector.load %arg13[%c32_75, %c0_76] : memref<80x64xf32, #tpu.memory_space<vmem>>, vector<8x64xf32>
    tpu.vector_store %arg13[%c32_75, %c0_76], %103 {strides = array<i32>} : memref<80x64xf32, #tpu.memory_space<vmem>>, vector<8x64xf32>,
    %c0_77 = arith.constant 0 : index
    %c129_78 = arith.constant 129 : index
    %105 = vector.load %arg12[%c0_77, %c129_78] : memref<8x320xf32, #tpu.memory_space<vmem>>, vector<8x64xf32>
    %106 = vector.extract_strided_slice %79 {offsets = [5, 0], sizes = [1, 64], strides = [1, 1]} : vector<9x64xf32> to vector<1x64xf32>
    %107 = vector.broadcast %106 : vector<1x64xf32> to vector<8x64xf32>
    %108 = arith.mulf %105, %107 : vector<8x64xf32>
    %c40_79 = arith.constant 40 : index
    %c0_80 = arith.constant 0 : index
    %109 = vector.load %arg13[%c40_79, %c0_80] : memref<80x64xf32, #tpu.memory_space<vmem>>, vector<8x64xf32>
    tpu.vector_store %arg13[%c40_79, %c0_80], %108 {strides = array<i32>} : memref<80x64xf32, #tpu.memory_space<vmem>>, vector<8x64xf32>,
    %c0_81 = arith.constant 0 : index
    %c135 = arith.constant 135 : index
    %110 = vector.load %arg12[%c0_81, %c135] : memref<8x320xf32, #tpu.memory_space<vmem>>, vector<8x64xf32>
    %111 = vector.extract_strided_slice %79 {offsets = [6, 0], sizes = [1, 64], strides = [1, 1]} : vector<9x64xf32> to vector<1x64xf32>
    %112 = vector.broadcast %111 : vector<1x64xf32> to vector<8x64xf32>
    %113 = arith.mulf %110, %112 : vector<8x64xf32>
    %c48_82 = arith.constant 48 : index
    %c0_83 = arith.constant 0 : index
    %114 = vector.load %arg13[%c48_82, %c0_83] : memref<80x64xf32, #tpu.memory_space<vmem>>, vector<8x64xf32>
    tpu.vector_store %arg13[%c48_82, %c0_83], %113 {strides = array<i32>} : memref<80x64xf32, #tpu.memory_space<vmem>>, vector<8x64xf32>,
    %c0_84 = arith.constant 0 : index
    %c136 = arith.constant 136 : index
    %115 = vector.load %arg12[%c0_84, %c136] : memref<8x320xf32, #tpu.memory_space<vmem>>, vector<8x64xf32>
    %116 = vector.extract_strided_slice %79 {offsets = [7, 0], sizes = [1, 64], strides = [1, 1]} : vector<9x64xf32> to vector<1x64xf32>
    %117 = vector.broadcast %116 : vector<1x64xf32> to vector<8x64xf32>
    %118 = arith.mulf %115, %117 : vector<8x64xf32>
    %c56_85 = arith.constant 56 : index
    %c0_86 = arith.constant 0 : index
    %119 = vector.load %arg13[%c56_85, %c0_86] : memref<80x64xf32, #tpu.memory_space<vmem>>, vector<8x64xf32>
    tpu.vector_store %arg13[%c56_85, %c0_86], %118 {strides = array<i32>} : memref<80x64xf32, #tpu.memory_space<vmem>>, vector<8x64xf32>,
    %c0_87 = arith.constant 0 : index
    %c137 = arith.constant 137 : index
    %120 = vector.load %arg12[%c0_87, %c137] : memref<8x320xf32, #tpu.memory_space<vmem>>, vector<8x64xf32>
    %121 = vector.extract_strided_slice %79 {offsets = [8, 0], sizes = [1, 64], strides = [1, 1]} : vector<9x64xf32> to vector<1x64xf32>
    %122 = vector.broadcast %121 : vector<1x64xf32> to vector<8x64xf32>
    %123 = arith.mulf %120, %122 : vector<8x64xf32>
    %c64_88 = arith.constant 64 : index
    %c0_89 = arith.constant 0 : index
    %124 = vector.load %arg13[%c64_88, %c0_89] : memref<80x64xf32, #tpu.memory_space<vmem>>, vector<8x64xf32>
    tpu.vector_store %arg13[%c64_88, %c0_89], %123 {strides = array<i32>} : memref<80x64xf32, #tpu.memory_space<vmem>>, vector<8x64xf32>,
    %cst_90 = arith.constant 1.000000e+00 : f32
    %125 = vector.broadcast %cst_90 : f32 to vector<8x64xf32>
    %c72_91 = arith.constant 72 : index
    %c0_92 = arith.constant 0 : index
    %126 = vector.load %arg13[%c72_91, %c0_92] : memref<80x64xf32, #tpu.memory_space<vmem>>, vector<8x64xf32>
    tpu.vector_store %arg13[%c72_91, %c0_92], %125 {strides = array<i32>} : memref<80x64xf32, #tpu.memory_space<vmem>>, vector<8x64xf32>,
    %c0_93 = arith.constant 0 : index
    %c0_94 = arith.constant 0 : index
    %127 = vector.load %arg3[%c0_93, %c0_94] : memref<16x80xf32, #tpu.memory_space<vmem>>, vector<16x80xf32>
    %c0_95 = arith.constant 0 : index
    %c0_96 = arith.constant 0 : index
    %128 = vector.load %arg13[%c0_95, %c0_96] : memref<80x64xf32, #tpu.memory_space<vmem>>, vector<80x64xf32>
    %cst_97 = arith.constant dense<0.000000e+00> : vector<16x64xf32>
    %129 = tpu.matmul %127, %128, %cst_97 {dimension_numbers = #tpu.dot_dimension_numbers<[1], [0], [0], [1], [0, 0, 1, 1], [], []>} : vector<16x80xf32>, vector<80x64xf32>, vector<16x64xf32> -> vector<16x64xf32>
    %cst_98 = arith.constant 0.000000e+00 : f32
    %130 = vector.broadcast %cst_98 : f32 to vector<16x64xf32>
    %131 = arith.maximumf %129, %130 : vector<16x64xf32>
    %c0_99 = arith.constant 0 : index
    %c0_100 = arith.constant 0 : index
    %c0_101 = arith.constant 0 : index
    %132 = vector.load %arg8[%c0_99, %c0_100, %c0_101] : memref<1x16x64xf32, #tpu.memory_space<vmem>>, vector<1x16x64xf32>
    %133 = vector.shape_cast %132 : vector<1x16x64xf32> to vector<16x64xf32>
    %134 = vector.shape_cast %131 : vector<16x64xf32> to vector<1x16x64xf32>
    tpu.vector_store %arg8[%c0_99, %c0_100, %c0_101], %134 {strides = array<i32>} : memref<1x16x64xf32, #tpu.memory_space<vmem>>, vector<1x16x64xf32>,
    return
  }
  func.func @transform_0(%arg0: i32) -> (i32, i32, i32) {
    %c0_i32 = arith.constant 0 : i32
    %c0_i32_0 = arith.constant 0 : i32
    %c0_i32_1 = arith.constant 0 : i32
    return %arg0, %c0_i32, %c0_i32_0 : i32, i32, i32
  }
  func.func @transform_1(%arg0: i32) -> (i32, i32) {
    %c0_i32 = arith.constant 0 : i32
    %c0_i32_0 = arith.constant 0 : i32
    %c0_i32_1 = arith.constant 0 : i32
    return %c0_i32, %c0_i32_0 : i32, i32
  }
  func.func @transform_2(%arg0: i32) -> (i32, i32) {
    %c0_i32 = arith.constant 0 : i32
    %c0_i32_0 = arith.constant 0 : i32
    %c0_i32_1 = arith.constant 0 : i32
    return %c0_i32, %c0_i32_0 : i32, i32
  }
  func.func @transform_3(%arg0: i32) -> (i32, i32) {
    %c0_i32 = arith.constant 0 : i32
    %c0_i32_0 = arith.constant 0 : i32
    %c0_i32_1 = arith.constant 0 : i32
    return %c0_i32, %c0_i32_0 : i32, i32
  }
  func.func @transform_4(%arg0: i32) -> (i32, i32) {
    %c0_i32 = arith.constant 0 : i32
    %c0_i32_0 = arith.constant 0 : i32
    %c0_i32_1 = arith.constant 0 : i32
    return %c0_i32, %c0_i32_0 : i32, i32
  }
  func.func @transform_5(%arg0: i32) -> (i32, i32) {
    %c0_i32 = arith.constant 0 : i32
    %c0_i32_0 = arith.constant 0 : i32
    %c0_i32_1 = arith.constant 0 : i32
    return %c0_i32, %c0_i32_0 : i32, i32
  }
  func.func @transform_6(%arg0: i32) -> (i32, i32, i32) {
    %c0_i32 = arith.constant 0 : i32
    %c0_i32_0 = arith.constant 0 : i32
    %c0_i32_1 = arith.constant 0 : i32
    return %arg0, %c0_i32, %c0_i32_0 : i32, i32, i32
  }
  func.func @transform_7(%arg0: i32) -> (i32, i32, i32) {
    %c0_i32 = arith.constant 0 : i32
    %c0_i32_0 = arith.constant 0 : i32
    %c0_i32_1 = arith.constant 0 : i32
    return %arg0, %c0_i32, %c0_i32_0 : i32, i32, i32
  }
}

</mosaic_0001>

<llo_original>
// kernel: feature_extractor_forward.1
$region0: #{feature_extractor_forward.1}
  #allocation0 [shape = 'u32[]', space=smem, size = 0x4, offset = 0x4, fixed_abs, tag = 'smem constant byte address 0x4 - core index']
  #allocation1 [shape = 'u32[72,128]{1,0:T(1,128)}', space=vmem, size = 0x9000, scoped, tag = 'internal scratch']
  #allocation2 [shape = 'f32[8,512]{1,0:T(8,128)}', space=vmem, size = 0x4000, scoped, tag = 'scratch operand']
  #allocation3 [shape = 'f32[80,256]{1,0:T(8,128)}', space=vmem, size = 0x14000, scoped, tag = 'scratch operand']
  #allocation4 [shape = 'f32[8,384]{1,0:T(8,128)}', space=vmem, size = 0x3000, scoped, tag = 'scratch operand']
  #allocation5 [shape = 'f32[8,320]{1,0:T(8,128)}', space=vmem, size = 0x3000, scoped, tag = 'scratch operand']
  #allocation6 [shape = 'f32[80,64]{1,0:T(8,128)}', space=vmem, size = 0xa000, scoped, tag = 'scratch operand']
  %s0 = inlined_call_operand.vmem [shape: f32[2,8,256], index: 0, kind: input, shape index: {}]
  %s1 = inlined_call_operand.vmem [shape: f32[8,80], index: 1, kind: input, shape index: {}]
  %s2 = inlined_call_operand.vmem [shape: f32[16,80], index: 2, kind: input, shape index: {}]
  %s3 = inlined_call_operand.vmem [shape: f32[256,64], index: 3, kind: input, shape index: {}]
  %s4 = inlined_call_operand.vmem [shape: f32[9,256], index: 4, kind: input, shape index: {}]
  %s5 = inlined_call_operand.vmem [shape: f32[9,64], index: 5, kind: input, shape index: {}]
  %s6 = inlined_call_operand.vmem [shape: f32[2,8,256], index: 6, kind: output, shape index: {0}]
  %s7 = inlined_call_operand.vmem [shape: f32[2,16,64], index: 7, kind: output, shape index: {1}]
  %8 = xla_tuple %s6, %s7
  %s9 = sld [smem:[#allocation0]]
  $region65: #{feature_extractor_forward.1} parent=0
    _
  %s11 = ssub.s32 1, %s9
  %s12 = scalar_select 0, %s11, %s9
  loop: start=0, step=1, limit=4
  $region2: #{feature_extractor_forward.1} parent=0 // loop_pre_header
    _
  $region3: #{feature_extractor_forward.1} parent=0 // loop_header
    %s14 = sphi 0, %s18
    %p15 = scmp.ge.s32.totalorder %s14, 4
    %s24 = sphi 0, %s26
    %s27 = sphi 0, %s24
    %s28 = sphi 0, %s27
    %s44 = sphi 0, %s28
    %s48 = sphi 0, %s48
    %s50 = sphi 0, %s48
    %s51 = sphi 0, %s50
    %s65 = sphi 0, %s51
    %s69 = sphi 0, %s69
    %s71 = sphi 0, %s69
    %s72 = sphi 0, %s71
    %s86 = sphi 0, %s72
    %s90 = sphi 0, %s90
    %s92 = sphi 0, %s90
    %s93 = sphi 0, %s92
    %s107 = sphi 0, %s93
    %s111 = sphi 0, %s111
    %s113 = sphi 0, %s111
    %s114 = sphi 0, %s113
    %s128 = sphi 0, %s114
    %s132 = sphi 0, %s132
    %s134 = sphi 0, %s132
    %s135 = sphi 0, %s134
    %s149 = sphi 0, %s135
    %s155 = sphi 0, %s157
    %s158 = sphi 0, %s155
    %s159 = sphi 0, %s158
    %s175 = sphi 0, %s159
    %s181 = sphi 0, %s183
    %s184 = sphi 0, %s181
    %s185 = sphi 0, %s184
    %s201 = sphi 0, %s185
  $region4: #{feature_extractor_forward.1} parent=0 // loop_header_branch
    %17 = sbr.rel (%p15) target = $region8
  $region5: #{feature_extractor_forward.1} parent=0 // loop_body
    %s19 = ssub.s32 %s14, 1
    %s20 = ssub.s32 %s14, 2
    %s21 = sadd.s32 %s14, 1
    %s22 = ssub.s32 %s14, %s21
    %p23 = scmp.eq.s32.totalorder %s22, 0
    %s25 = sadd.s32 %s24, 1
    %s26 = scalar_select %p23, %s24, %s25
    %p29 = pneg %p23
    %p30 = scmp.eq.s32.totalorder %s14, 1
    %p31 = por %p29, %p30
    %p32 = scmp.ne.s32.totalorder %s24, %s27
    %p33 = scmp.eq.s32.totalorder %s14, 0
    %p34 = por %p32, %p33
    %p35 = scmp.ne.s32.totalorder %s24, %s27
    %p36 = scmp.eq.s32.totalorder %s19, 1
    %p37 = por %p35, %p36
    %p38 = scmp.ne.s32.totalorder %s27, %s28
    %p39 = scmp.eq.s32.totalorder %s19, 0
    %p40 = por %p38, %p39
    %p41 = scmp.ne.s32.totalorder %s27, %s28
    %p42 = scmp.eq.s32.totalorder %s20, 1
    %p43 = por %p41, %p42
    %p45 = scmp.ne.s32.totalorder %s28, %s44
    %p46 = scmp.eq.s32.totalorder %s20, 0
    %p47 = por %p45, %p46
    %s49 = sadd.s32 %s48, 1
    %p52 = scmp.eq.s32.totalorder %s14, 1
    %p53 = scmp.ne.s32.totalorder %s48, %s50
    %p54 = scmp.eq.s32.totalorder %s14, 0
    %p55 = por %p53, %p54
    %p56 = scmp.ne.s32.totalorder %s48, %s50
    %p57 = scmp.eq.s32.totalorder %s19, 1
    %p58 = por %p56, %p57
    %p59 = scmp.ne.s32.totalorder %s50, %s51
    %p60 = scmp.eq.s32.totalorder %s19, 0
    %p61 = por %p59, %p60
    %p62 = scmp.ne.s32.totalorder %s50, %s51
    %p63 = scmp.eq.s32.totalorder %s20, 1
    %p64 = por %p62, %p63
    %p66 = scmp.ne.s32.totalorder %s51, %s65
    %p67 = scmp.eq.s32.totalorder %s20, 0
    %p68 = por %p66, %p67
    %s70 = sadd.s32 %s69, 1
    %p73 = scmp.eq.s32.totalorder %s14, 1
    %p74 = scmp.ne.s32.totalorder %s69, %s71
    %p75 = scmp.eq.s32.totalorder %s14, 0
    %p76 = por %p74, %p75
    %p77 = scmp.ne.s32.totalorder %s69, %s71
    %p78 = scmp.eq.s32.totalorder %s19, 1
    %p79 = por %p77, %p78
    %p80 = scmp.ne.s32.totalorder %s71, %s72
    %p81 = scmp.eq.s32.totalorder %s19, 0
    %p82 = por %p80, %p81
    %p83 = scmp.ne.s32.totalorder %s71, %s72
    %p84 = scmp.eq.s32.totalorder %s20, 1
    %p85 = por %p83, %p84
    %p87 = scmp.ne.s32.totalorder %s72, %s86
    %p88 = scmp.eq.s32.totalorder %s20, 0
    %p89 = por %p87, %p88
    %s91 = sadd.s32 %s90, 1
    %p94 = scmp.eq.s32.totalorder %s14, 1
    %p95 = scmp.ne.s32.totalorder %s90, %s92
    %p96 = scmp.eq.s32.totalorder %s14, 0
    %p97 = por %p95, %p96
    %p98 = scmp.ne.s32.totalorder %s90, %s92
    %p99 = scmp.eq.s32.totalorder %s19, 1
    %p100 = por %p98, %p99
    %p101 = scmp.ne.s32.totalorder %s92, %s93
    %p102 = scmp.eq.s32.totalorder %s19, 0
    %p103 = por %p101, %p102
    %p104 = scmp.ne.s32.totalorder %s92, %s93
    %p105 = scmp.eq.s32.totalorder %s20, 1
    %p106 = por %p104, %p105
    %p108 = scmp.ne.s32.totalorder %s93, %s107
    %p109 = scmp.eq.s32.totalorder %s20, 0
    %p110 = por %p108, %p109
    %s112 = sadd.s32 %s111, 1
    %p115 = scmp.eq.s32.totalorder %s14, 1
    %p116 = scmp.ne.s32.totalorder %s111, %s113
    %p117 = scmp.eq.s32.totalorder %s14, 0
    %p118 = por %p116, %p117
    %p119 = scmp.ne.s32.totalorder %s111, %s113
    %p120 = scmp.eq.s32.totalorder %s19, 1
    %p121 = por %p119, %p120
    %p122 = scmp.ne.s32.totalorder %s113, %s114
    %p123 = scmp.eq.s32.totalorder %s19, 0
    %p124 = por %p122, %p123
    %p125 = scmp.ne.s32.totalorder %s113, %s114
    %p126 = scmp.eq.s32.totalorder %s20, 1
    %p127 = por %p125, %p126
    %p129 = scmp.ne.s32.totalorder %s114, %s128
    %p130 = scmp.eq.s32.totalorder %s20, 0
    %p131 = por %p129, %p130
    %s133 = sadd.s32 %s132, 1
    %p136 = scmp.eq.s32.totalorder %s14, 1
    %p137 = scmp.ne.s32.totalorder %s132, %s134
    %p138 = scmp.eq.s32.totalorder %s14, 0
    %p139 = por %p137, %p138
    %p140 = scmp.ne.s32.totalorder %s132, %s134
    %p141 = scmp.eq.s32.totalorder %s19, 1
    %p142 = por %p140, %p141
    %p143 = scmp.ne.s32.totalorder %s134, %s135
    %p144 = scmp.eq.s32.totalorder %s19, 0
    %p145 = por %p143, %p144
    %p146 = scmp.ne.s32.totalorder %s134, %s135
    %p147 = scmp.eq.s32.totalorder %s20, 1
    %p148 = por %p146, %p147
    %p150 = scmp.ne.s32.totalorder %s135, %s149
    %p151 = scmp.eq.s32.totalorder %s20, 0
    %p152 = por %p150, %p151
    %s153 = ssub.s32 %s14, %s21
    %p154 = scmp.eq.s32.totalorder %s153, 0
    %s156 = sadd.s32 %s155, 1
    %s157 = scalar_select %p154, %s155, %s156
    %p160 = pneg %p154
    %p161 = scmp.eq.s32.totalorder %s14, 1
    %p162 = por %p160, %p161
    %p163 = scmp.ne.s32.totalorder %s155, %s158
    %p164 = scmp.eq.s32.totalorder %s14, 0
    %p165 = por %p163, %p164
    %p166 = scmp.ne.s32.totalorder %s155, %s158
    %p167 = scmp.eq.s32.totalorder %s19, 1
    %p168 = por %p166, %p167
    %p169 = scmp.ne.s32.totalorder %s158, %s159
    %p170 = scmp.eq.s32.totalorder %s19, 0
    %p171 = por %p169, %p170
    %p172 = scmp.ne.s32.totalorder %s158, %s159
    %p173 = scmp.eq.s32.totalorder %s20, 1
    %p174 = por %p172, %p173
    %p176 = scmp.ne.s32.totalorder %s159, %s175
    %p177 = scmp.eq.s32.totalorder %s20, 0
    %p178 = por %p176, %p177
    %s179 = ssub.s32 %s14, %s21
    %p180 = scmp.eq.s32.totalorder %s179, 0
    %s182 = sadd.s32 %s181, 1
    %s183 = scalar_select %p180, %s181, %s182
    %p186 = pneg %p180
    %p187 = scmp.eq.s32.totalorder %s14, 1
    %p188 = por %p186, %p187
    %p189 = scmp.ne.s32.totalorder %s181, %s184
    %p190 = scmp.eq.s32.totalorder %s14, 0
    %p191 = por %p189, %p190
    %p192 = scmp.ne.s32.totalorder %s181, %s184
    %p193 = scmp.eq.s32.totalorder %s19, 1
    %p194 = por %p192, %p193
    %p195 = scmp.ne.s32.totalorder %s184, %s185
    %p196 = scmp.eq.s32.totalorder %s19, 0
    %p197 = por %p195, %p196
    %p198 = scmp.ne.s32.totalorder %s184, %s185
    %p199 = scmp.eq.s32.totalorder %s20, 1
    %p200 = por %p198, %p199
    %p202 = scmp.ne.s32.totalorder %s185, %s201
    %p203 = scmp.eq.s32.totalorder %s20, 0
    %p204 = por %p202, %p203
    %p205 = scmp.le.s32.totalorder 1, %s14
    %p206 = scmp.lt.s32.totalorder %s14, 3
    %p207 = pnand %p205, %p206
    %p208 = pneg %p207
    // Predicated region
    $region9: #{feature_extractor_forward.1} parent=5 // pred_check
      _
    $region10: #{feature_extractor_forward.1} parent=5 // pred_check_branch
      %210 = sbr.rel (%p207) target = $region12
    $region11: #{feature_extractor_forward.1} parent=5 // pred_region
      %s211 = ssub.s32 %s14, 1
      // Predicated region
      $region13: #{feature_extractor_forward.1} parent=11 // pred_check
        %p212 = pneg %p61
      $region14: #{feature_extractor_forward.1} parent=11 // pred_check_branch
        %214 = sbr.rel (%p212) target = $region16
      $region15: #{feature_extractor_forward.1} parent=11 // pred_region
        _
      $region16: #{feature_extractor_forward.1} parent=11 // pred_fallthru
        _
      // Predicated region
      $region17: #{feature_extractor_forward.1} parent=11 // pred_check
        %p215 = pneg %p82
      $region18: #{feature_extractor_forward.1} parent=11 // pred_check_branch
        %217 = sbr.rel (%p215) target = $region20
      $region19: #{feature_extractor_forward.1} parent=11 // pred_region
        _
      $region20: #{feature_extractor_forward.1} parent=11 // pred_fallthru
        _
      // Predicated region
      $region21: #{feature_extractor_forward.1} parent=11 // pred_check
        %p218 = pneg %p103
      $region22: #{feature_extractor_forward.1} parent=11 // pred_check_branch
        %220 = sbr.rel (%p218) target = $region24
      $region23: #{feature_extractor_forward.1} parent=11 // pred_region
        _
      $region24: #{feature_extractor_forward.1} parent=11 // pred_fallthru
        _
      // Predicated region
      $region25: #{feature_extractor_forward.1} parent=11 // pred_check
        %p221 = pneg %p124
      $region26: #{feature_extractor_forward.1} parent=11 // pred_check_branch
        %223 = sbr.rel (%p221) target = $region28
      $region27: #{feature_extractor_forward.1} parent=11 // pred_region
        _
      $region28: #{feature_extractor_forward.1} parent=11 // pred_fallthru
        _
      // Predicated region
      $region29: #{feature_extractor_forward.1} parent=11 // pred_check
        %p224 = pneg %p145
      $region30: #{feature_extractor_forward.1} parent=11 // pred_check_branch
        %226 = sbr.rel (%p224) target = $region32
      $region31: #{feature_extractor_forward.1} parent=11 // pred_region
        _
      $region32: #{feature_extractor_forward.1} parent=11 // pred_fallthru
        _
    $region12: #{feature_extractor_forward.1} parent=5 // pred_fallthru
      _
    %p227 = scmp.lt.s32.totalorder %s14, 2
    // Predicated region
    $region33: #{feature_extractor_forward.1} parent=5 // pred_check
      %p228 = pneg %p227
    $region34: #{feature_extractor_forward.1} parent=5 // pred_check_branch
      %230 = sbr.rel (%p228) target = $region36
    $region35: #{feature_extractor_forward.1} parent=5 // pred_region
      // Predicated region
      $region37: #{feature_extractor_forward.1} parent=35 // pred_check
        %p231 = pneg %p34
      $region38: #{feature_extractor_forward.1} parent=35 // pred_check_branch
        %233 = sbr.rel (%p231) target = $region40
      $region39: #{feature_extractor_forward.1} parent=35 // pred_region
        %p234 = scmp.lt.s32.totalorder %s14, 1
        %s235 = scalar_select %p234, %s14, 1
        %s236 = smul.addr %s235, 2
        %s237 = smul.addr %s236, 8
        %s238 = scalar_lea.vmem %s0, %s237
      $region40: #{feature_extractor_forward.1} parent=35 // pred_fallthru
        _
    $region36: #{feature_extractor_forward.1} parent=5 // pred_fallthru
      _
    %p239 = scmp.le.s32.totalorder 1, %s14
    %p240 = scmp.lt.s32.totalorder %s14, 3
    %p241 = pnand %p239, %p240
    %p242 = pneg %p241
    // Predicated region
    $region41: #{feature_extractor_forward.1} parent=5 // pred_check
      _
    $region42: #{feature_extractor_forward.1} parent=5 // pred_check_branch
      %244 = sbr.rel (%p241) target = $region44
    $region43: #{feature_extractor_forward.1} parent=5 // pred_region
      %s245 = ssub.s32 %s14, 1
      %p246 = scmp.lt.s32.totalorder %s19, 1
      %s247 = scalar_select %p246, %s19, 1
      %s248 = smul.addr %s247, 2
      %s249 = smul.addr %s248, 8
      %s250 = scalar_lea.vmem %s0, %s249
      %p251 = pneg %p40
      %p252 = pneg %p37
      %p253 = pneg %p61
      %p254 = pneg %p58
      %p255 = pneg %p82
      %p256 = pneg %p79
      %p257 = pneg %p103
      %p258 = pneg %p100
      %p259 = pneg %p124
      %p260 = pneg %p121
      %p261 = pneg %p145
      %p262 = pneg %p142
      %p263 = pneg %p171
      %p264 = pneg %p168
      %p265 = scmp.lt.s32.totalorder %s19, 1
      %s266 = scalar_select %p265, %s19, 1
      %s267 = smul.addr %s266, 2
      %s268 = smul.addr %s267, 8
      %s269 = scalar_lea.vmem %s6, %s268
      %p270 = pneg %p197
      %p271 = pneg %p194
      %p272 = scmp.lt.s32.totalorder %s19, 1
      %s273 = scalar_select %p272, %s19, 1
      %s274 = smul.addr %s273, 2
      %s275 = smul.addr %s274, 8
      %s276 = scalar_lea.vmem %s7, %s275
      %p277 = scmp.lt.s32.totalorder %s19, 1
      %s278 = scalar_select %p277, %s19, 1
      %s279 = smul.addr %s278, 2
      %s280 = smul.addr %s279, 8
      %s281 = scalar_lea.vmem %s0, %s280
      %p282 = scmp.lt.s32.totalorder %s19, 1
      %s283 = scalar_select %p282, %s19, 1
      %s284 = smul.addr %s283, 2
      %s285 = smul.addr %s284, 8
      %s286 = scalar_lea.vmem %s6, %s285
      %p287 = scmp.lt.s32.totalorder %s19, 1
      %s288 = scalar_select %p287, %s19, 1
      %s289 = smul.addr %s288, 2
      %s290 = smul.addr %s289, 8
      %s291 = scalar_lea.vmem %s7, %s290
      %292 = vst [vmem:[#allocation2] sm:$0xff] 0.0
      %293 = vst [vmem:[#allocation2 + $0x18] sm:$0xff] 0.0
      %v294 = vld [vmem:[%s281] sm:$0xff]
      %v295 = vld [vmem:[%s281 + $0x8] sm:$0xff]
      %296 = vst [vmem:[#allocation2 + $0x8] sm:$0xff] %v294
      %297 = vst [vmem:[#allocation2 + $0x10] sm:$0xff] %v295
      %v298 = vld [vmem:[%s4] sm:$0xff]
      %v299 = vld [vmem:[%s4 + $0x8] sm:$0xff]
      %v300 = vld [vmem:[%s4 + $0x10] sm:$0x1]
      %v301 = vld [vmem:[%s4 + $0x18] sm:$0x1]
      %v302 = vld [vmem:[#allocation2] sm:$0xff]
      %v303 = vld [vmem:[#allocation2 + $0x8] sm:$0xff]
      %v304 = vld [vmem:[#allocation2 + $0x10] sm:$0xff]
      %v305 = vperm.slane %v298, 0
      %v306 = vperm.slane %v299, 0
      %309 = vrot.lane.b32.xlu0 %v305, 111
      %v310 = vpop.permute.xlu0 %309
      %311 = vrot.lane.b32.xlu0 %v306, 111
      %v312 = vpop.permute.xlu0 %311
      %vm313 = vcmask 908288
      %v314 = vsel %vm313, %v310, %v312
      %v318 = vmul.f32 %v302, %v310
      %v319 = vmul.f32 %v303, %v314
      %v320 = vmul.f32 %v304, %v312
      %324 = vrot.lane.b32.xlu0 %v318, 17
      %v325 = vpop.permute.xlu0 %324
      %326 = vrot.lane.b32.xlu0 %v319, 17
      %v327 = vpop.permute.xlu0 %326
      %328 = vrot.lane.b32.xlu0 %v320, 17
      %v329 = vpop.permute.xlu0 %328
      %vm330 = vcmask 138240
      %v331 = vsel %vm330, %v325, %v327
      %v332 = vsel %vm330, %v327, %v329
      %335 = vst [vmem:[#allocation3] sm:$0xff] %v331
      %336 = vst [vmem:[#allocation3 + $0x8] sm:$0xff] %v332
      %v337 = vld [vmem:[#allocation2] sm:$0xff]
      %v338 = vld [vmem:[#allocation2 + $0x8] sm:$0xff]
      %v339 = vld [vmem:[#allocation2 + $0x10] sm:$0xff]
      %v340 = vperm.slane %v298, 1
      %v341 = vperm.slane %v299, 1
      %344 = vrot.lane.b32.xlu0 %v340, 112
      %v345 = vpop.permute.xlu0 %344
      %346 = vrot.lane.b32.xlu0 %v341, 112
      %v347 = vpop.permute.xlu0 %346
      %vm348 = vcmask 916480
      %v349 = vsel %vm348, %v345, %v347
      %v353 = vmul.f32 %v337, %v345
      %v354 = vmul.f32 %v338, %v349
      %v355 = vmul.f32 %v339, %v347
      %359 = vrot.lane.b32.xlu0 %v353, 16
      %v360 = vpop.permute.xlu0 %359
      %361 = vrot.lane.b32.xlu0 %v354, 16
      %v362 = vpop.permute.xlu0 %361
      %363 = vrot.lane.b32.xlu0 %v355, 16
      %v364 = vpop.permute.xlu0 %363
      %vm365 = vcmask 130048
      %v366 = vsel %vm365, %v360, %v362
      %v367 = vsel %vm365, %v362, %v364
      %370 = vst [vmem:[#allocation3 + $0x10] sm:$0xff] %v366
      %371 = vst [vmem:[#allocation3 + $0x18] sm:$0xff] %v367
      %v372 = vld [vmem:[#allocation2] sm:$0xff]
      %v373 = vld [vmem:[#allocation2 + $0x8] sm:$0xff]
      %v374 = vld [vmem:[#allocation2 + $0x10] sm:$0xff]
      %v375 = vperm.slane %v298, 2
      %v376 = vperm.slane %v299, 2
      %379 = vrot.lane.b32.xlu0 %v375, 113
      %v380 = vpop.permute.xlu0 %379
      %381 = vrot.lane.b32.xlu0 %v376, 113
      %v382 = vpop.permute.xlu0 %381
      %vm383 = vcmask 924672
      %v384 = vsel %vm383, %v380, %v382
      %v388 = vmul.f32 %v372, %v380
      %v389 = vmul.f32 %v373, %v384
      %v390 = vmul.f32 %v374, %v382
      %394 = vrot.lane.b32.xlu0 %v388, 15
      %v395 = vpop.permute.xlu0 %394
      %396 = vrot.lane.b32.xlu0 %v389, 15
      %v397 = vpop.permute.xlu0 %396
      %398 = vrot.lane.b32.xlu0 %v390, 15
      %v399 = vpop.permute.xlu0 %398
      %vm400 = vcmask 121856
      %v401 = vsel %vm400, %v395, %v397
      %v402 = vsel %vm400, %v397, %v399
      %405 = vst [vmem:[#allocation3 + $0x20] sm:$0xff] %v401
      %406 = vst [vmem:[#allocation3 + $0x28] sm:$0xff] %v402
      %v407 = vld [vmem:[#allocation2] sm:$0xff]
      %v408 = vld [vmem:[#allocation2 + $0x8] sm:$0xff]
      %v409 = vld [vmem:[#allocation2 + $0x10] sm:$0xff]
      %v410 = vperm.slane %v298, 3
      %v411 = vperm.slane %v299, 3
      %414 = vrot.lane.b32.xlu0 %v410, 127
      %v415 = vpop.permute.xlu0 %414
      %416 = vrot.lane.b32.xlu0 %v411, 127
      %v417 = vpop.permute.xlu0 %416
      %vm418 = vcmask 1039360
      %v419 = vsel %vm418, %v415, %v417
      %v423 = vmul.f32 %v407, %v415
      %v424 = vmul.f32 %v408, %v419
      %v425 = vmul.f32 %v409, %v417
      %429 = vrot.lane.b32.xlu0 %v423, 1
      %v430 = vpop.permute.xlu0 %429
      %431 = vrot.lane.b32.xlu0 %v424, 1
      %v432 = vpop.permute.xlu0 %431
      %433 = vrot.lane.b32.xlu0 %v425, 1
      %v434 = vpop.permute.xlu0 %433
      %vm435 = vcmask 7168
      %v436 = vsel %vm435, %v430, %v432
      %v437 = vsel %vm435, %v432, %v434
      %440 = vst [vmem:[#allocation3 + $0x30] sm:$0xff] %v436
      %441 = vst [vmem:[#allocation3 + $0x38] sm:$0xff] %v437
      %v442 = vld [vmem:[#allocation2 + $0x8] sm:$0xff]
      %v443 = vld [vmem:[#allocation2 + $0x10] sm:$0xff]
      %v444 = vperm.slane %v298, 4
      %v445 = vperm.slane %v299, 4
      %v446 = vmul.f32 %v442, %v444
      %v447 = vmul.f32 %v443, %v445
      %448 = vst [vmem:[#allocation3 + $0x40] sm:$0xff] %v446
      %449 = vst [vmem:[#allocation3 + $0x48] sm:$0xff] %v447
      %v450 = vld [vmem:[#allocation2 + $0x8] sm:$0xff]
      %v451 = vld [vmem:[#allocation2 + $0x10] sm:$0xff]
      %v452 = vld [vmem:[#allocation2 + $0x18] sm:$0xff]
      %v453 = vperm.slane %v298, 5
      %v454 = vperm.slane %v299, 5
      %457 = vrot.lane.b32.xlu0 %v453, 1
      %v458 = vpop.permute.xlu0 %457
      %459 = vrot.lane.b32.xlu0 %v454, 1
      %v460 = vpop.permute.xlu0 %459
      %v461 = vsel %vm435, %v458, %v460
      %v465 = vmul.f32 %v450, %v458
      %v466 = vmul.f32 %v451, %v461
      %v467 = vmul.f32 %v452, %v460
      %471 = vrot.lane.b32.xlu0 %v465, 127
      %v472 = vpop.permute.xlu0 %471
      %473 = vrot.lane.b32.xlu0 %v466, 127
      %v474 = vpop.permute.xlu0 %473
      %475 = vrot.lane.b32.xlu0 %v467, 127
      %v476 = vpop.permute.xlu0 %475
      %v477 = vsel %vm418, %v472, %v474
      %v478 = vsel %vm418, %v474, %v476
      %481 = vst [vmem:[#allocation3 + $0x50] sm:$0xff] %v477
      %482 = vst [vmem:[#allocation3 + $0x58] sm:$0xff] %v478
      %v483 = vld [vmem:[#allocation2 + $0x8] sm:$0xff]
      %v484 = vld [vmem:[#allocation2 + $0x10] sm:$0xff]
      %v485 = vld [vmem:[#allocation2 + $0x18] sm:$0xff]
      %v486 = vperm.slane %v298, 6
      %v487 = vperm.slane %v299, 6
      %490 = vrot.lane.b32.xlu0 %v486, 15
      %v491 = vpop.permute.xlu0 %490
      %492 = vrot.lane.b32.xlu0 %v487, 15
      %v493 = vpop.permute.xlu0 %492
      %v494 = vsel %vm400, %v491, %v493
      %v498 = vmul.f32 %v483, %v491
      %v499 = vmul.f32 %v484, %v494
      %v500 = vmul.f32 %v485, %v493
      %504 = vrot.lane.b32.xlu0 %v498, 113
      %v505 = vpop.permute.xlu0 %504
      %506 = vrot.lane.b32.xlu0 %v499, 113
      %v507 = vpop.permute.xlu0 %506
      %508 = vrot.lane.b32.xlu0 %v500, 113
      %v509 = vpop.permute.xlu0 %508
      %v510 = vsel %vm383, %v505, %v507
      %v511 = vsel %vm383, %v507, %v509
      %514 = vst [vmem:[#allocation3 + $0x60] sm:$0xff] %v510
      %515 = vst [vmem:[#allocation3 + $0x68] sm:$0xff] %v511
      %v516 = vld [vmem:[#allocation2 + $0x8] sm:$0xff]
      %v517 = vld [vmem:[#allocation2 + $0x10] sm:$0xff]
      %v518 = vld [vmem:[#allocation2 + $0x18] sm:$0xff]
      %v519 = vperm.slane %v298, 7
      %v520 = vperm.slane %v299, 7
      %523 = vrot.lane.b32.xlu0 %v519, 16
      %v524 = vpop.permute.xlu0 %523
      %525 = vrot.lane.b32.xlu0 %v520, 16
      %v526 = vpop.permute.xlu0 %525
      %v527 = vsel %vm365, %v524, %v526
      %v531 = vmul.f32 %v516, %v524
      %v532 = vmul.f32 %v517, %v527
      %v533 = vmul.f32 %v518, %v526
      %537 = vrot.lane.b32.xlu0 %v531, 112
      %v538 = vpop.permute.xlu0 %537
      %539 = vrot.lane.b32.xlu0 %v532, 112
      %v540 = vpop.permute.xlu0 %539
      %541 = vrot.lane.b32.xlu0 %v533, 112
      %v542 = vpop.permute.xlu0 %541
      %v543 = vsel %vm348, %v538, %v540
      %v544 = vsel %vm348, %v540, %v542
      %547 = vst [vmem:[#allocation3 + $0x70] sm:$0xff] %v543
      %548 = vst [vmem:[#allocation3 + $0x78] sm:$0xff] %v544
      %v549 = vld [vmem:[#allocation2 + $0x8] sm:$0xff]
      %v550 = vld [vmem:[#allocation2 + $0x10] sm:$0xff]
      %v551 = vld [vmem:[#allocation2 + $0x18] sm:$0xff]
      %v552 = vperm.slane %v300, 0
      %v553 = vperm.slane %v301, 0
      %556 = vrot.lane.b32.xlu0 %v552, 17
      %v557 = vpop.permute.xlu0 %556
      %558 = vrot.lane.b32.xlu0 %v553, 17
      %v559 = vpop.permute.xlu0 %558
      %v560 = vsel %vm330, %v557, %v559
      %v564 = vmul.f32 %v549, %v557
      %v565 = vmul.f32 %v550, %v560
      %v566 = vmul.f32 %v551, %v559
      %570 = vrot.lane.b32.xlu0 %v564, 111
      %v571 = vpop.permute.xlu0 %570
      %572 = vrot.lane.b32.xlu0 %v565, 111
      %v573 = vpop.permute.xlu0 %572
      %574 = vrot.lane.b32.xlu0 %v566, 111
      %v575 = vpop.permute.xlu0 %574
      %v576 = vsel %vm313, %v571, %v573
      %v577 = vsel %vm313, %v573, %v575
      %580 = vst [vmem:[#allocation3 + $0x80] sm:$0xff] %v576
      %581 = vst [vmem:[#allocation3 + $0x88] sm:$0xff] %v577
      %582 = vst [vmem:[#allocation3 + $0x90] sm:$0xff] 1.0
      %583 = vst [vmem:[#allocation3 + $0x98] sm:$0xff] 1.0
      %v584 = vld [vmem:[%s1] sm:$0xff]
      %v585 = vld [vmem:[#allocation3] sm:$0xff]
      %v586 = vld [vmem:[#allocation3 + $0x8] sm:$0xff]
      %v587 = vld [vmem:[#allocation3 + $0x10] sm:$0xff]
      %v588 = vld [vmem:[#allocation3 + $0x18] sm:$0xff]
      %v589 = vld [vmem:[#allocation3 + $0x20] sm:$0xff]
      %v590 = vld [vmem:[#allocation3 + $0x28] sm:$0xff]
      %v591 = vld [vmem:[#allocation3 + $0x30] sm:$0xff]
      %v592 = vld [vmem:[#allocation3 + $0x38] sm:$0xff]
      %v593 = vld [vmem:[#allocation3 + $0x40] sm:$0xff]
      %v594 = vld [vmem:[#allocation3 + $0x48] sm:$0xff]
      %v595 = vld [vmem:[#allocation3 + $0x50] sm:$0xff]
      %v596 = vld [vmem:[#allocation3 + $0x58] sm:$0xff]
      %v597 = vld [vmem:[#allocation3 + $0x60] sm:$0xff]
      %v598 = vld [vmem:[#allocation3 + $0x68] sm:$0xff]
      %v599 = vld [vmem:[#allocation3 + $0x70] sm:$0xff]
      %v600 = vld [vmem:[#allocation3 + $0x78] sm:$0xff]
      %v601 = vld [vmem:[#allocation3 + $0x80] sm:$0xff]
      %v602 = vld [vmem:[#allocation3 + $0x88] sm:$0xff]
      %v603 = vld [vmem:[#allocation3 + $0x90] sm:$0xff]
      %v604 = vld [vmem:[#allocation3 + $0x98] sm:$0xff]
      %vm605 = vcmask 654336
      %v607 = vsel %vm605, %v584, 0
      %609 = vmatpush.msra.mxu0 0.0
      %610 = vmatpush.msra.mxu0 0.0
      %611 = vmatpush.msra.mxu0 0.0
      %612 = vmatpush.msra.mxu0 0.0
      %613 = vmatpush.msra.mxu0 0.0
      %614 = vmatpush.msra.mxu0 0.0
      %615 = vmatpush.msra.mxu0 %v603
      %616 = vmatpush.msra.mxu0 %v601
      %617 = vmatpush.msra.mxu0 %v599
      %618 = vmatpush.msra.mxu0 %v597
      %619 = vmatpush.msra.mxu0 %v595
      %620 = vmatpush.msra.mxu0 %v593
      %621 = vmatpush.msra.mxu0 %v591
      %622 = vmatpush.msra.mxu0 %v589
      %623 = vmatpush.msra.mxu0 %v587
      %624 = vmatpush.msra.mxu0 %v585
      %625 = vmatmul.f32.gmra.mxu0 %v607
      %v626 = vpop.f32.mrf.mxu0
      %v627 = vadd.f32 0.0, %v626
      %628 = vdwg.mxu0
      %629 = vmatpush.msra.mxu0 0.0
      %630 = vmatpush.msra.mxu0 0.0
      %631 = vmatpush.msra.mxu0 0.0
      %632 = vmatpush.msra.mxu0 0.0
      %633 = vmatpush.msra.mxu0 0.0
      %634 = vmatpush.msra.mxu0 0.0
      %635 = vmatpush.msra.mxu0 %v604
      %636 = vmatpush.msra.mxu0 %v602
      %637 = vmatpush.msra.mxu0 %v600
      %638 = vmatpush.msra.mxu0 %v598
      %639 = vmatpush.msra.mxu0 %v596
      %640 = vmatpush.msra.mxu0 %v594
      %641 = vmatpush.msra.mxu0 %v592
      %642 = vmatpush.msra.mxu0 %v590
      %643 = vmatpush.msra.mxu0 %v588
      %644 = vmatpush.msra.mxu0 %v586
      %645 = vmatmul.f32.gmra.mxu0 %v607
      %v646 = vpop.f32.mrf.mxu0
      %v647 = vadd.f32 0.0, %v646
      %648 = vdwg.mxu0
      %v649 = vmax.f32 %v627, 0.0
      %v650 = vmax.f32 %v647, 0.0
      %651 = vst [vmem:[%s286] sm:$0xff] %v649
      %652 = vst [vmem:[%s286 + $0x8] sm:$0xff] %v650
      %653 = vst [vmem:[#allocation4 + $0x10] sm:$0xff] 0.0
      %654 = vst [vmem:[#allocation4] sm:$0xff] %v649
      %655 = vst [vmem:[#allocation4 + $0x8] sm:$0xff] %v650
      %v656 = vld [vmem:[#allocation4] sm:$0xff]
      %v657 = vld [vmem:[#allocation4 + $0x8] sm:$0xff]
      %v658 = vld [vmem:[#allocation4 + $0x10] sm:$0xff]
      %662 = vrot.lane.b32.xlu0 %v656, 127
      %v663 = vpop.permute.xlu0 %662
      %664 = vrot.lane.b32.xlu0 %v657, 127
      %v665 = vpop.permute.xlu0 %664
      %666 = vrot.lane.b32.xlu0 %v658, 127
      %v667 = vpop.permute.xlu0 %666
      %v668 = vsel %vm418, %v663, %v665
      %v669 = vsel %vm418, %v665, %v667
      %v672 = vmax.f32 %v649, %v668
      %v673 = vmax.f32 %v650, %v669
      %v675 = vmax.f32 %v656, %v668
      %v676 = vmax.f32 %v657, %v669
      %v677 = vmax.f32 %v658, %v667
      %681 = vrot.lane.b32.xlu0 %v675, 112
      %v682 = vpop.permute.xlu0 %681
      %683 = vrot.lane.b32.xlu0 %v676, 112
      %v684 = vpop.permute.xlu0 %683
      %685 = vrot.lane.b32.xlu0 %v677, 112
      %v686 = vpop.permute.xlu0 %685
      %v687 = vsel %vm348, %v682, %v684
      %v688 = vsel %vm348, %v684, %v686
      %v691 = vmax.f32 %v672, %v687
      %v692 = vmax.f32 %v673, %v688
      %v693 = vld [vmem:[%s3] sm:$0xff]
      %v694 = vld [vmem:[%s3 + $0x8] sm:$0xff]
      %v695 = vld [vmem:[%s3 + $0x10] sm:$0xff]
      %v696 = vld [vmem:[%s3 + $0x18] sm:$0xff]
      %v697 = vld [vmem:[%s3 + $0x20] sm:$0xff]
      %v698 = vld [vmem:[%s3 + $0x28] sm:$0xff]
      %v699 = vld [vmem:[%s3 + $0x30] sm:$0xff]
      %v700 = vld [vmem:[%s3 + $0x38] sm:$0xff]
      %v701 = vld [vmem:[%s3 + $0x40] sm:$0xff]
      %v702 = vld [vmem:[%s3 + $0x48] sm:$0xff]
      %v703 = vld [vmem:[%s3 + $0x50] sm:$0xff]
      %v704 = vld [vmem:[%s3 + $0x58] sm:$0xff]
      %v705 = vld [vmem:[%s3 + $0x60] sm:$0xff]
      %v706 = vld [vmem:[%s3 + $0x68] sm:$0xff]
      %v707 = vld [vmem:[%s3 + $0x70] sm:$0xff]
      %v708 = vld [vmem:[%s3 + $0x78] sm:$0xff]
      %v709 = vld [vmem:[%s3 + $0x80] sm:$0xff]
      %v710 = vld [vmem:[%s3 + $0x88] sm:$0xff]
      %v711 = vld [vmem:[%s3 + $0x90] sm:$0xff]
      %v712 = vld [vmem:[%s3 + $0x98] sm:$0xff]
      %v713 = vld [vmem:[%s3 + $0xa0] sm:$0xff]
      %v714 = vld [vmem:[%s3 + $0xa8] sm:$0xff]
      %v715 = vld [vmem:[%s3 + $0xb0] sm:$0xff]
      %v716 = vld [vmem:[%s3 + $0xb8] sm:$0xff]
      %v717 = vld [vmem:[%s3 + $0xc0] sm:$0xff]
      %v718 = vld [vmem:[%s3 + $0xc8] sm:$0xff]
      %v719 = vld [vmem:[%s3 + $0xd0] sm:$0xff]
      %v720 = vld [vmem:[%s3 + $0xd8] sm:$0xff]
      %v721 = vld [vmem:[%s3 + $0xe0] sm:$0xff]
      %v722 = vld [vmem:[%s3 + $0xe8] sm:$0xff]
      %v723 = vld [vmem:[%s3 + $0xf0] sm:$0xff]
      %v724 = vld [vmem:[%s3 + $0xf8] sm:$0xff]
      %725 = vmatpush.msra.mxu0 %v708
      %726 = vmatpush.msra.mxu0 %v707
      %727 = vmatpush.msra.mxu0 %v706
      %728 = vmatpush.msra.mxu0 %v705
      %729 = vmatpush.msra.mxu0 %v704
      %730 = vmatpush.msra.mxu0 %v703
      %731 = vmatpush.msra.mxu0 %v702
      %732 = vmatpush.msra.mxu0 %v701
      %733 = vmatpush.msra.mxu0 %v700
      %734 = vmatpush.msra.mxu0 %v699
      %735 = vmatpush.msra.mxu0 %v698
      %736 = vmatpush.msra.mxu0 %v697
      %737 = vmatpush.msra.mxu0 %v696
      %738 = vmatpush.msra.mxu0 %v695
      %739 = vmatpush.msra.mxu0 %v694
      %740 = vmatpush.msra.mxu0 %v693
      %741 = vmatmul.f32.gmra.mxu0 %v691
      %v742 = vpop.f32.mrf.mxu0
      %v743 = vadd.f32 0.0, %v742
      %744 = vdwg.mxu0
      %745 = vmatpush.msra.mxu0 %v724
      %746 = vmatpush.msra.mxu0 %v723
      %747 = vmatpush.msra.mxu0 %v722
      %748 = vmatpush.msra.mxu0 %v721
      %749 = vmatpush.msra.mxu0 %v720
      %750 = vmatpush.msra.mxu0 %v719
      %751 = vmatpush.msra.mxu0 %v718
      %752 = vmatpush.msra.mxu0 %v717
      %753 = vmatpush.msra.mxu0 %v716
      %754 = vmatpush.msra.mxu0 %v715
      %755 = vmatpush.msra.mxu0 %v714
      %756 = vmatpush.msra.mxu0 %v713
      %757 = vmatpush.msra.mxu0 %v712
      %758 = vmatpush.msra.mxu0 %v711
      %759 = vmatpush.msra.mxu0 %v710
      %760 = vmatpush.msra.mxu0 %v709
      %761 = vmatmul.f32.gmra.mxu0 %v692
      %v762 = vpop.f32.mrf.mxu0
      %v763 = vadd.f32 %v743, %v762
      %764 = vdwg.mxu0
      %765 = vst [vmem:[#allocation5] sm:$0xff] 0.0
      %vm766 = vcmask 1048064
      %767 = vst.msk [vmem:[#allocation5 + $0x8] sm:$0xff] %vm766, 0.0
      %vm768 = vcmask 523264
      %769 = vst.msk [vmem:[#allocation5 + $0x10] sm:$0xff] %vm768, 0.0
      %770 = vst.msk [vmem:[#allocation5 + $0x8] sm:$0xff] %vm768, %v763
      %v771 = vld [vmem:[%s5] sm:$0xff]
      %v772 = vld [vmem:[%s5 + $0x8] sm:$0x1]
      %v773 = vld [vmem:[#allocation5] sm:$0xff]
      %v774 = vld [vmem:[#allocation5 + $0x8] sm:$0xff]
      %v775 = vperm.slane %v771, 0
      %777 = vrot.lane.b32.xlu0 %v775, 119
      %v778 = vpop.permute.xlu0 %777
      %v780 = vmul.f32 %v773, %v778
      %v781 = vmul.f32 %v774, %v778
      %784 = vrot.lane.b32.xlu0 %v780, 9
      %v785 = vpop.permute.xlu0 %784
      %786 = vrot.lane.b32.xlu0 %v781, 9
      %v787 = vpop.permute.xlu0 %786
      %vm788 = vcmask 72704
      %v789 = vsel %vm788, %v785, %v787
      %791 = vst.msk [vmem:[#allocation6] sm:$0xff] %vm768, %v789
      %v792 = vld [vmem:[#allocation5] sm:$0xff]
      %v793 = vld [vmem:[#allocation5 + $0x8] sm:$0xff]
      %v794 = vperm.slane %v771, 1
      %796 = vrot.lane.b32.xlu0 %v794, 120
      %v797 = vpop.permute.xlu0 %796
      %v799 = vmul.f32 %v792, %v797
      %v800 = vmul.f32 %v793, %v797
      %803 = vrot.lane.b32.xlu0 %v799, 8
      %v804 = vpop.permute.xlu0 %803
      %805 = vrot.lane.b32.xlu0 %v800, 8
      %v806 = vpop.permute.xlu0 %805
      %vm807 = vcmask 64512
      %v808 = vsel %vm807, %v804, %v806
      %810 = vst.msk [vmem:[#allocation6 + $0x8] sm:$0xff] %vm768, %v808
      %v811 = vld [vmem:[#allocation5] sm:$0xff]
      %v812 = vld [vmem:[#allocation5 + $0x8] sm:$0xff]
      %v813 = vperm.slane %v771, 2
      %815 = vrot.lane.b32.xlu0 %v813, 121
      %v816 = vpop.permute.xlu0 %815
      %v818 = vmul.f32 %v811, %v816
      %v819 = vmul.f32 %v812, %v816
      %822 = vrot.lane.b32.xlu0 %v818, 7
      %v823 = vpop.permute.xlu0 %822
      %824 = vrot.lane.b32.xlu0 %v819, 7
      %v825 = vpop.permute.xlu0 %824
      %vm826 = vcmask 56320
      %v827 = vsel %vm826, %v823, %v825
      %829 = vst.msk [vmem:[#allocation6 + $0x10] sm:$0xff] %vm768, %v827
      %v830 = vld [vmem:[#allocation5] sm:$0xff]
      %v831 = vld [vmem:[#allocation5 + $0x8] sm:$0xff]
      %v832 = vperm.slane %v771, 3
      %834 = vrot.lane.b32.xlu0 %v832, 127
      %v835 = vpop.permute.xlu0 %834
      %v837 = vmul.f32 %v830, %v835
      %v838 = vmul.f32 %v831, %v835
      %841 = vrot.lane.b32.xlu0 %v837, 1
      %v842 = vpop.permute.xlu0 %841
      %843 = vrot.lane.b32.xlu0 %v838, 1
      %v844 = vpop.permute.xlu0 %843
      %v845 = vsel %vm435, %v842, %v844
      %847 = vst.msk [vmem:[#allocation6 + $0x18] sm:$0xff] %vm768, %v845
      %v848 = vld [vmem:[#allocation5 + $0x8] sm:$0xff]
      %v849 = vperm.slane %v771, 4
      %v850 = vmul.f32 %v848, %v849
      %851 = vst.msk [vmem:[#allocation6 + $0x20] sm:$0xff] %vm768, %v850
      %v852 = vld [vmem:[#allocation5 + $0x8] sm:$0xff]
      %v853 = vperm.slane %v771, 5
      %855 = vrot.lane.b32.xlu0 %v853, 1
      %v856 = vpop.permute.xlu0 %855
      %v858 = vmul.f32 %v852, %v856
      %860 = vrot.lane.b32.xlu0 %v858, 127
      %v861 = vpop.permute.xlu0 %860
      %863 = vst.msk [vmem:[#allocation6 + $0x28] sm:$0xff] %vm768, %v861
      %v864 = vld [vmem:[#allocation5 + $0x8] sm:$0xff]
      %v865 = vperm.slane %v771, 6
      %867 = vrot.lane.b32.xlu0 %v865, 7
      %v868 = vpop.permute.xlu0 %867
      %v870 = vmul.f32 %v864, %v868
      %872 = vrot.lane.b32.xlu0 %v870, 121
      %v873 = vpop.permute.xlu0 %872
      %875 = vst.msk [vmem:[#allocation6 + $0x30] sm:$0xff] %vm768, %v873
      %v876 = vld [vmem:[#allocation5 + $0x8] sm:$0xff]
      %v877 = vperm.slane %v771, 7
      %879 = vrot.lane.b32.xlu0 %v877, 8
      %v880 = vpop.permute.xlu0 %879
      %v882 = vmul.f32 %v876, %v880
      %884 = vrot.lane.b32.xlu0 %v882, 120
      %v885 = vpop.permute.xlu0 %884
      %887 = vst.msk [vmem:[#allocation6 + $0x38] sm:$0xff] %vm768, %v885
      %v888 = vld [vmem:[#allocation5 + $0x8] sm:$0xff]
      %v889 = vperm.slane %v772, 0
      %891 = vrot.lane.b32.xlu0 %v889, 9
      %v892 = vpop.permute.xlu0 %891
      %v894 = vmul.f32 %v888, %v892
      %896 = vrot.lane.b32.xlu0 %v894, 119
      %v897 = vpop.permute.xlu0 %896
      %899 = vst.msk [vmem:[#allocation6 + $0x40] sm:$0xff] %vm768, %v897
      %900 = vst.msk [vmem:[#allocation6 + $0x48] sm:$0xff] %vm768, 1.0
      %v901 = vld [vmem:[%s2] sm:$0xff]
      %v902 = vld [vmem:[%s2 + $0x8] sm:$0xff]
      %v903 = vld [vmem:[#allocation6] sm:$0xff]
      %v904 = vld [vmem:[#allocation6 + $0x8] sm:$0xff]
      %v905 = vld [vmem:[#allocation6 + $0x10] sm:$0xff]
      %v906 = vld [vmem:[#allocation6 + $0x18] sm:$0xff]
      %v907 = vld [vmem:[#allocation6 + $0x20] sm:$0xff]
      %v908 = vld [vmem:[#allocation6 + $0x28] sm:$0xff]
      %v909 = vld [vmem:[#allocation6 + $0x30] sm:$0xff]
      %v910 = vld [vmem:[#allocation6 + $0x38] sm:$0xff]
      %v911 = vld [vmem:[#allocation6 + $0x40] sm:$0xff]
      %v912 = vld [vmem:[#allocation6 + $0x48] sm:$0xff]
      %v914 = vsel %vm605, %v901, 0
      %v917 = vsel %vm605, %v902, 0
      %919 = vmatpush.msra.mxu0 0.0
      %920 = vmatpush.msra.mxu0 0.0
      %921 = vmatpush.msra.mxu0 0.0
      %922 = vmatpush.msra.mxu0 0.0
      %923 = vmatpush.msra.mxu0 0.0
      %924 = vmatpush.msra.mxu0 0.0
      %925 = vmatpush.msra.mxu0 %v912
      %926 = vmatpush.msra.mxu0 %v911
      %927 = vmatpush.msra.mxu0 %v910
      %928 = vmatpush.msra.mxu0 %v909
      %929 = vmatpush.msra.mxu0 %v908
      %930 = vmatpush.msra.mxu0 %v907
      %931 = vmatpush.msra.mxu0 %v906
      %932 = vmatpush.msra.mxu0 %v905
      %933 = vmatpush.msra.mxu0 %v904
      %934 = vmatpush.msra.mxu0 %v903
      %935 = vmatmul.f32.gmra.mxu0 %v914
      %v936 = vpop.f32.mrf.mxu0
      %v937 = vadd.f32 0.0, %v936
      %938 = vmatmul.f32.gmra.mxu0 %v917
      %v939 = vpop.f32.mrf.mxu0
      %v940 = vadd.f32 0.0, %v939
      %941 = vdwg.mxu0
      %v942 = vmax.f32 %v937, 0.0
      %v943 = vmax.f32 %v940, 0.0
      %944 = vst.msk [vmem:[%s291] sm:$0xff] %vm768, %v942
      %945 = vst.msk [vmem:[%s291 + $0x8] sm:$0xff] %vm768, %v943
      %p946 = scmp.lt.s32.totalorder %s19, 1
      %s947 = scalar_select %p946, %s19, 1
      %s948 = smul.addr %s947, 2
      %s949 = smul.addr %s948, 8
      %s950 = scalar_lea.vmem %s6, %s949
      %p951 = scmp.lt.s32.totalorder %s19, 1
      %s952 = scalar_select %p951, %s19, 1
      %s953 = smul.addr %s952, 2
      %s954 = smul.addr %s953, 8
      %s955 = scalar_lea.vmem %s7, %s954
      // Predicated region
      $region45: #{feature_extractor_forward.1} parent=43 // pred_check
        %p956 = pneg %p168
      $region46: #{feature_extractor_forward.1} parent=43 // pred_check_branch
        %958 = sbr.rel (%p956) target = $region48
      $region47: #{feature_extractor_forward.1} parent=43 // pred_region
        _
      $region48: #{feature_extractor_forward.1} parent=43 // pred_fallthru
        _
      // Predicated region
      $region49: #{feature_extractor_forward.1} parent=43 // pred_check
        %p959 = pneg %p194
      $region50: #{feature_extractor_forward.1} parent=43 // pred_check_branch
        %961 = sbr.rel (%p959) target = $region52
      $region51: #{feature_extractor_forward.1} parent=43 // pred_region
        _
      $region52: #{feature_extractor_forward.1} parent=43 // pred_fallthru
        _
    $region44: #{feature_extractor_forward.1} parent=5 // pred_fallthru
      _
    %p962 = scmp.le.s32.totalorder 2, %s14
    // Predicated region
    $region53: #{feature_extractor_forward.1} parent=5 // pred_check
      %p963 = pneg %p962
    $region54: #{feature_extractor_forward.1} parent=5 // pred_check_branch
      %965 = sbr.rel (%p963) target = $region56
    $region55: #{feature_extractor_forward.1} parent=5 // pred_region
      %s966 = ssub.s32 %s14, 2
      // Predicated region
      $region57: #{feature_extractor_forward.1} parent=55 // pred_check
        %p967 = pneg %p174
      $region58: #{feature_extractor_forward.1} parent=55 // pred_check_branch
        %969 = sbr.rel (%p967) target = $region60
      $region59: #{feature_extractor_forward.1} parent=55 // pred_region
        %p970 = scmp.lt.s32.totalorder %s20, 1
        %s971 = scalar_select %p970, %s20, 1
        %s972 = smul.addr %s971, 2
        %s973 = smul.addr %s972, 8
        %s974 = scalar_lea.vmem %s6, %s973
      $region60: #{feature_extractor_forward.1} parent=55 // pred_fallthru
        _
      // Predicated region
      $region61: #{feature_extractor_forward.1} parent=55 // pred_check
        %p975 = pneg %p200
      $region62: #{feature_extractor_forward.1} parent=55 // pred_check_branch
        %977 = sbr.rel (%p975) target = $region64
      $region63: #{feature_extractor_forward.1} parent=55 // pred_region
        %p978 = scmp.lt.s32.totalorder %s20, 1
        %s979 = scalar_select %p978, %s20, 1
        %s980 = smul.addr %s979, 2
        %s981 = smul.addr %s980, 8
        %s982 = scalar_lea.vmem %s7, %s981
      $region64: #{feature_extractor_forward.1} parent=55 // pred_fallthru
        _
    $region56: #{feature_extractor_forward.1} parent=5 // pred_fallthru
      _
  $region6: #{feature_extractor_forward.1} parent=0 // loop_footer
    %s18 = sadd.s32 1, %s14
  $region7: #{feature_extractor_forward.1} parent=0 // loop_footer_branch
    %13 = sbr.rel target = $region3
  $region8: #{feature_extractor_forward.1} parent=0 // loop_exit
    _

</llo_original>
